<compile_context>
chip_gen: v6e
topology: v6e:2x2x1
jax: 0.10.0
libtpu: 0.0.40
codegen_flags: <defaults>
</compile_context>

<pallas_src>
import math

import jax
import jax.numpy as jnp
from jax.experimental import pallas as pl
from jax.experimental.pallas import tpu as pltpu


# ---------------------------------------------------------------------------
# Small helpers
# ---------------------------------------------------------------------------
def _round_up(n, m):
    return ((n + m - 1) // m) * m


def _pad2d(x, rows, cols):
    r, c = x.shape
    return jnp.pad(x, ((0, rows - r), (0, cols - c)))


# ---------------------------------------------------------------------------
# Kernel 1: lane-padded GEMM + bias + ReLU  (used for every conv layer via
# im2col; conv weights are reshaped to (Cin*kh*kw, Cout) in the wrapper).
# ---------------------------------------------------------------------------
def _gemm_bias_relu_kernel(x_ref, w_ref, b_ref, o_ref):
    y = jnp.dot(x_ref[...], w_ref[...], preferred_element_type=jnp.float32)
    o_ref[...] = jnp.maximum(y + b_ref[...], 0.0).astype(o_ref.dtype)


def gemm_bias_relu(x, w, b, *, tm_max=256):
    """relu(x @ w + b). x:(M,K), w:(K,N), b:(N,). Lane-padded Pallas GEMM."""
    M, K = x.shape
    N = w.shape[1]
    k_pad = _round_up(K, 128)
    n_pad = _round_up(N, 128)
    tm = tm_max if M >= tm_max else _round_up(M, 8)
    m_pad = _round_up(M, tm)

    x_p = _pad2d(x, m_pad, k_pad)
    w_p = _pad2d(w, k_pad, n_pad)
    b_p = _pad2d(b.reshape(1, N), 1, n_pad)

    cost = pl.CostEstimate(
        flops=2 * M * K * N,
        transcendentals=0,
        bytes_accessed=4 * (m_pad * k_pad + k_pad * n_pad + n_pad + m_pad * n_pad),
    )

    out = pl.pallas_call(
        _gemm_bias_relu_kernel,
        out_shape=jax.ShapeDtypeStruct((m_pad, n_pad), x.dtype),
        grid_spec=pl.GridSpec(
            grid=(m_pad // tm,),
            in_specs=[
                pl.BlockSpec((tm, k_pad), lambda i: (i, 0)),     # row tile
                pl.BlockSpec((k_pad, n_pad), lambda i: (0, 0)),  # weights pinned
                pl.BlockSpec((1, n_pad), lambda i: (0, 0)),      # bias pinned
            ],
            out_specs=pl.BlockSpec((tm, n_pad), lambda i: (i, 0)),
        ),
        compiler_params=pltpu.CompilerParams(
            dimension_semantics=("parallel",),
        ),
        cost_estimate=cost,
    )(x_p, w_p, b_p)
    return out[:M, :N]


# ---------------------------------------------------------------------------
# Kernel 2: fused FC tail  F4 + F5:  (relu(x @ W1 + b1)) @ W2 + b2
# Hidden (84-wide, padded to 128) stays resident in VMEM/vregs — no HBM
# round-trip between the two Linear layers.
# ---------------------------------------------------------------------------
def _fc_tail_kernel(x_ref, w1_ref, b1_ref, w2_ref, b2_ref, o_ref):
    h = jnp.dot(x_ref[...], w1_ref[...], preferred_element_type=jnp.float32)
    h = jnp.maximum(h + b1_ref[...], 0.0)
    y = jnp.dot(h, w2_ref[...], preferred_element_type=jnp.float32)
    o_ref[...] = (y + b2_ref[...]).astype(o_ref.dtype)


def fc_tail(x, w1, b1, w2, b2, *, tb_max=512):
    """x:(B,120), w1:(120,84), b1:(84,), w2:(84,10), b2:(10,) -> (B,10)."""
    B, K = x.shape
    H = w1.shape[1]
    N = w2.shape[1]
    k_pad = _round_up(K, 128)   # 120 -> 128
    h_pad = _round_up(H, 128)   # 84  -> 128
    n_pad = _round_up(N, 128)   # 10  -> 128

    # Batch tile: multiple of 8 sublanes; capped so the double-buffered x/out
    # blocks (2 * 2 * tb*128*4B ~= 1 MiB at tb=512) stay far under v7x's
    # 64 MiB VMEM no matter how large B grows.
    tb = tb_max if B >= tb_max else _round_up(B, 8)
    b_pad = _round_up(B, tb)

    x_p = _pad2d(x, b_pad, k_pad)
    w1_p = _pad2d(w1, k_pad, h_pad)
    b1_p = _pad2d(b1.reshape(1, H), 1, h_pad)
    w2_p = _pad2d(w2, h_pad, n_pad)
    b2_p = _pad2d(b2.reshape(1, N), 1, n_pad)

    cost = pl.CostEstimate(
        flops=2 * B * (K * H + H * N),
        transcendentals=0,
        bytes_accessed=4 * (b_pad * k_pad + k_pad * h_pad + h_pad
                            + h_pad * n_pad + n_pad + b_pad * n_pad),
    )

    out = pl.pallas_call(
        _fc_tail_kernel,
        out_shape=jax.ShapeDtypeStruct((b_pad, n_pad), x.dtype),
        grid_spec=pl.GridSpec(
            grid=(b_pad // tb,),
            in_specs=[
                pl.BlockSpec((tb, k_pad), lambda i: (i, 0)),      # x tile
                pl.BlockSpec((k_pad, h_pad), lambda i: (0, 0)),   # W1 pinned
                pl.BlockSpec((1, h_pad), lambda i: (0, 0)),       # b1 pinned
                pl.BlockSpec((h_pad, n_pad), lambda i: (0, 0)),   # W2 pinned
                pl.BlockSpec((1, n_pad), lambda i: (0, 0)),       # b2 pinned
            ],
            out_specs=pl.BlockSpec((tb, n_pad), lambda i: (i, 0)),
        ),
        compiler_params=pltpu.CompilerParams(
            dimension_semantics=("parallel",),   # shards batch tiles on v7x
        ),
        cost_estimate=cost,
    )(x_p, w1_p, b1_p, w2_p, b2_p)
    return out[:B, :N]


# ---------------------------------------------------------------------------
# Conv layers as im2col + Pallas GEMM; pool / residual add as plain jnp.
# ---------------------------------------------------------------------------
def _im2col(x, kh, kw):
    """(B,C,H,W) -> ((B*OH*OW, C*kh*kw), OH, OW), matching the flattening of
    PyTorch conv weights w.reshape(Cout, Cin*kh*kw)."""
    B, C, H, W = x.shape
    oh, ow = H - kh + 1, W - kw + 1
    cols = []
    for i in range(kh):
        for j in range(kw):
            cols.append(x[:, :, i:i + oh, j:j + ow])        # (B, C, OH, OW)
    p = jnp.stack(cols, axis=2)                              # (B, C, kh*kw, OH, OW)
    p = p.transpose(0, 3, 4, 1, 2).reshape(B * oh * ow, C * kh * kw)
    return p, oh, ow


def conv2d_relu(x, w, b):
    """Valid, stride-1 Conv2d + ReLU (PyTorch semantics) via Pallas GEMM.
    x:(B,Cin,H,W), w:(Cout,Cin,kh,kw), b:(Cout,)."""
    B = x.shape[0]
    cout, cin, kh, kw = w.shape
    patches, oh, ow = _im2col(x, kh, kw)
    wmat = w.reshape(cout, cin * kh * kw).T                  # (Cin*kh*kw, Cout)
    y = gemm_bias_relu(patches, wmat, b)                     # (B*OH*OW, Cout)
    return y.reshape(B, oh, ow, cout).transpose(0, 3, 1, 2)  # (B, Cout, OH, OW)


def maxpool_2x2(x):
    # TODO(synk): the 2x2/stride-2 max-pool, the C2 residual add, and the
    # im2col patch extraction are plain jnp/XLA ops (layout + trivial
    # elementwise), not Pallas kernels.
    B, C, H, W = x.shape
    return x.reshape(B, C, H // 2, 2, W // 2, 2).max(axis=(3, 5))


# ---------------------------------------------------------------------------
# Full LeNet5 forward (matches the PyTorch module's forward()).
# ---------------------------------------------------------------------------
@jax.jit
def lenet5_forward(img, p):
    # C1: conv(1->6, 5x5) + ReLU + maxpool  -> (B, 6, 14, 14)
    x = maxpool_2x2(conv2d_relu(img, p["c1_w"], p["c1_b"]))
    # Two C2 branches (conv 6->16, 5x5 + ReLU + pool), residual add:
    #   output = c2_2(out); output += c2_1(out)
    br1 = maxpool_2x2(conv2d_relu(x, p["c2a_w"], p["c2a_b"]))   # c2_1
    br2 = maxpool_2x2(conv2d_relu(x, p["c2b_w"], p["c2b_b"]))   # c2_2
    y = br2 + br1                                               # (B, 16, 5, 5)
    # C3: conv(16->120, 5x5) + ReLU -> (B, 120, 1, 1), then flatten to (B, 120)
    z = conv2d_relu(y, p["c3_w"], p["c3_b"]).reshape(img.shape[0], -1)
    # Fused F4 + F5 in one Pallas call -> (B, 10) logits
    return fc_tail(z, p["f4_w"], p["f4_b"], p["f5_w"], p["f5_b"])


def lenet5_reference(img, p):
    """Pure-JAX reference (lax conv / jnp matmul) for correctness checking."""
    def conv(x, w, b):
        y = jax.lax.conv_general_dilated(
            x, w, window_strides=(1, 1), padding="VALID",
            dimension_numbers=("NCHW", "OIHW", "NCHW"))
        return jnp.maximum(y + b.reshape(1, -1, 1, 1), 0.0)

    x = maxpool_2x2(conv(img, p["c1_w"], p["c1_b"]))
    br1 = maxpool_2x2(conv(x, p["c2a_w"], p["c2a_b"]))
    br2 = maxpool_2x2(conv(x, p["c2b_w"], p["c2b_b"]))
    y = br2 + br1
    z = conv(y, p["c3_w"], p["c3_b"]).reshape(img.shape[0], -1)
    h = jnp.maximum(z @ p["f4_w"] + p["f4_b"], 0.0)
    return h @ p["f5_w"] + p["f5_b"]


# ---------------------------------------------------------------------------
# Deterministic parameter init mimicking PyTorch defaults (U(+/-1/sqrt(fan_in))).
# Linear weights are stored pre-transposed as (in, out) so kernels compute x @ W.
# ---------------------------------------------------------------------------
def init_lenet5_params(key):
    def conv_init(k, cout, cin, kh, kw):
        k_w, k_b = jax.random.split(k)
        bound = 1.0 / math.sqrt(cin * kh * kw)
        w = jax.random.uniform(k_w, (cout, cin, kh, kw), jnp.float32, -bound, bound)
        b = jax.random.uniform(k_b, (cout,), jnp.float32, -bound, bound)
        return w, b

    def linear_init(k, fin, fout):
        k_w, k_b = jax.random.split(k)
        bound = 1.0 / math.sqrt(fin)
        w = jax.random.uniform(k_w, (fin, fout), jnp.float32, -bound, bound)
        b = jax.random.uniform(k_b, (fout,), jnp.float32, -bound, bound)
        return w, b

    ks = jax.random.split(key, 6)
    p = {}
    p["c1_w"], p["c1_b"] = conv_init(ks[0], 6, 1, 5, 5)
    p["c2a_w"], p["c2a_b"] = conv_init(ks[1], 16, 6, 5, 5)
    p["c2b_w"], p["c2b_b"] = conv_init(ks[2], 16, 6, 5, 5)
    p["c3_w"], p["c3_b"] = conv_init(ks[3], 120, 16, 5, 5)
    p["f4_w"], p["f4_b"] = linear_init(ks[4], 120, 84)
    p["f5_w"], p["f5_b"] = linear_init(ks[5], 84, 10)
    return p


if __name__ == "__main__":
    key = jax.random.PRNGKey(0)
    k_img, k_param = jax.random.split(key)

    B = 4
    img = jax.random.normal(k_img, (B, 1, 32, 32), dtype=jnp.float32)
    params = init_lenet5_params(k_param)

    logits = jax.block_until_ready(lenet5_forward(img, params))
    ref = jax.block_until_ready(lenet5_reference(img, params))

    assert logits.shape == (B, 10)
    assert jnp.allclose(logits, ref, atol=1e-4, rtol=1e-3), (
        "max abs err", float(jnp.max(jnp.abs(logits - ref))))

    print("KERNEL_OK")
</pallas_src>

<mosaic_0001>
module attributes {stable_mosaic.version = 11 : i64} {
  func.func @_gemm_bias_relu_kernel(%arg0: i32, %arg1: memref<256x128xf32, #tpu.memory_space<vmem>>, %arg2: memref<128x128xf32, #tpu.memory_space<vmem>>, %arg3: memref<1x128xf32, #tpu.memory_space<vmem>>, %arg4: memref<256x128xf32, #tpu.memory_space<vmem>>) attributes {dimension_semantics = [#tpu.dimension_semantics<parallel>], iteration_bounds = array<i64: 13>, scalar_prefetch = 0 : i64, scratch_operands = 0 : i64, tpu.core_type = #tpu.core_type<tc>, window_params = [{transform_indices = @transform_0, window_bounds = array<i64: 256, 128>}, {pipeline_mode = #tpu.pipeline_mode<synchronous>, transform_indices = @transform_1, window_bounds = array<i64: 128, 128>}, {pipeline_mode = #tpu.pipeline_mode<synchronous>, transform_indices = @transform_2, window_bounds = array<i64: 1, 128>}, {transform_indices = @transform_3, window_bounds = array<i64: 256, 128>}]} {
    %c0 = arith.constant 0 : index
    %c0_0 = arith.constant 0 : index
    %0 = vector.load %arg1[%c0, %c0_0] : memref<256x128xf32, #tpu.memory_space<vmem>>, vector<256x128xf32>
    %c0_1 = arith.constant 0 : index
    %c0_2 = arith.constant 0 : index
    %1 = vector.load %arg2[%c0_1, %c0_2] : memref<128x128xf32, #tpu.memory_space<vmem>>, vector<128x128xf32>
    %cst = arith.constant dense<0.000000e+00> : vector<256x128xf32>
    %2 = tpu.matmul %0, %1, %cst {dimension_numbers = #tpu.dot_dimension_numbers<[1], [0], [0], [1], [0, 0, 1, 1], [], []>} : vector<256x128xf32>, vector<128x128xf32>, vector<256x128xf32> -> vector<256x128xf32>
    %c0_3 = arith.constant 0 : index
    %c0_4 = arith.constant 0 : index
    %3 = vector.load %arg3[%c0_3, %c0_4] : memref<1x128xf32, #tpu.memory_space<vmem>>, vector<1x128xf32>
    %4 = vector.broadcast %3 : vector<1x128xf32> to vector<256x128xf32>
    %5 = arith.addf %2, %4 : vector<256x128xf32>
    %cst_5 = arith.constant 0.000000e+00 : f32
    %6 = vector.broadcast %cst_5 : f32 to vector<256x128xf32>
    %7 = arith.maximumf %5, %6 : vector<256x128xf32>
    %c0_6 = arith.constant 0 : index
    %c0_7 = arith.constant 0 : index
    %8 = vector.load %arg4[%c0_6, %c0_7] : memref<256x128xf32, #tpu.memory_space<vmem>>, vector<256x128xf32>
    tpu.vector_store %arg4[%c0_6, %c0_7], %7 {strides = array<i32>} : memref<256x128xf32, #tpu.memory_space<vmem>>, vector<256x128xf32>,
    return
  }
  func.func @transform_0(%arg0: i32) -> (i32, i32) {
    %c0_i32 = arith.constant 0 : i32
    %c0_i32_0 = arith.constant 0 : i32
    return %arg0, %c0_i32 : i32, i32
  }
  func.func @transform_1(%arg0: i32) -> (i32, i32) {
    %c0_i32 = arith.constant 0 : i32
    %c0_i32_0 = arith.constant 0 : i32
    %c0_i32_1 = arith.constant 0 : i32
    return %c0_i32, %c0_i32_0 : i32, i32
  }
  func.func @transform_2(%arg0: i32) -> (i32, i32) {
    %c0_i32 = arith.constant 0 : i32
    %c0_i32_0 = arith.constant 0 : i32
    %c0_i32_1 = arith.constant 0 : i32
    return %c0_i32, %c0_i32_0 : i32, i32
  }
  func.func @transform_3(%arg0: i32) -> (i32, i32) {
    %c0_i32 = arith.constant 0 : i32
    %c0_i32_0 = arith.constant 0 : i32
    return %arg0, %c0_i32 : i32, i32
  }
}

module attributes {stable_mosaic.version = 11 : i64} {
  func.func @_gemm_bias_relu_kernel(%arg0: i32, %arg1: memref<256x256xf32, #tpu.memory_space<vmem>>, %arg2: memref<256x128xf32, #tpu.memory_space<vmem>>, %arg3: memref<1x128xf32, #tpu.memory_space<vmem>>, %arg4: memref<256x128xf32, #tpu.memory_space<vmem>>) attributes {dimension_semantics = [#tpu.dimension_semantics<parallel>], iteration_bounds = array<i64: 2>, scalar_prefetch = 0 : i64, scratch_operands = 0 : i64, tpu.core_type = #tpu.core_type<tc>, window_params = [{transform_indices = @transform_0, window_bounds = array<i64: 256, 256>}, {pipeline_mode = #tpu.pipeline_mode<synchronous>, transform_indices = @transform_1, window_bounds = array<i64: 256, 128>}, {pipeline_mode = #tpu.pipeline_mode<synchronous>, transform_indices = @transform_2, window_bounds = array<i64: 1, 128>}, {transform_indices = @transform_3, window_bounds = array<i64: 256, 128>}]} {
    %c0 = arith.constant 0 : index
    %c0_0 = arith.constant 0 : index
    %0 = vector.load %arg1[%c0, %c0_0] : memref<256x256xf32, #tpu.memory_space<vmem>>, vector<256x256xf32>
    %c0_1 = arith.constant 0 : index
    %c0_2 = arith.constant 0 : index
    %1 = vector.load %arg2[%c0_1, %c0_2] : memref<256x128xf32, #tpu.memory_space<vmem>>, vector<256x128xf32>
    %cst = arith.constant dense<0.000000e+00> : vector<256x128xf32>
    %2 = tpu.matmul %0, %1, %cst {dimension_numbers = #tpu.dot_dimension_numbers<[1], [0], [0], [1], [0, 0, 1, 1], [], []>} : vector<256x256xf32>, vector<256x128xf32>, vector<256x128xf32> -> vector<256x128xf32>
    %c0_3 = arith.constant 0 : index
    %c0_4 = arith.constant 0 : index
    %3 = vector.load %arg3[%c0_3, %c0_4] : memref<1x128xf32, #tpu.memory_space<vmem>>, vector<1x128xf32>
    %4 = vector.broadcast %3 : vector<1x128xf32> to vector<256x128xf32>
    %5 = arith.addf %2, %4 : vector<256x128xf32>
    %cst_5 = arith.constant 0.000000e+00 : f32
    %6 = vector.broadcast %cst_5 : f32 to vector<256x128xf32>
    %7 = arith.maximumf %5, %6 : vector<256x128xf32>
    %c0_6 = arith.constant 0 : index
    %c0_7 = arith.constant 0 : index
    %8 = vector.load %arg4[%c0_6, %c0_7] : memref<256x128xf32, #tpu.memory_space<vmem>>, vector<256x128xf32>
    tpu.vector_store %arg4[%c0_6, %c0_7], %7 {strides = array<i32>} : memref<256x128xf32, #tpu.memory_space<vmem>>, vector<256x128xf32>,
    return
  }
  func.func @transform_0(%arg0: i32) -> (i32, i32) {
    %c0_i32 = arith.constant 0 : i32
    %c0_i32_0 = arith.constant 0 : i32
    return %arg0, %c0_i32 : i32, i32
  }
  func.func @transform_1(%arg0: i32) -> (i32, i32) {
    %c0_i32 = arith.constant 0 : i32
    %c0_i32_0 = arith.constant 0 : i32
    %c0_i32_1 = arith.constant 0 : i32
    return %c0_i32, %c0_i32_0 : i32, i32
  }
  func.func @transform_2(%arg0: i32) -> (i32, i32) {
    %c0_i32 = arith.constant 0 : i32
    %c0_i32_0 = arith.constant 0 : i32
    %c0_i32_1 = arith.constant 0 : i32
    return %c0_i32, %c0_i32_0 : i32, i32
  }
  func.func @transform_3(%arg0: i32) -> (i32, i32) {
    %c0_i32 = arith.constant 0 : i32
    %c0_i32_0 = arith.constant 0 : i32
    return %arg0, %c0_i32 : i32, i32
  }
}

module attributes {stable_mosaic.version = 11 : i64} {
  func.func @_gemm_bias_relu_kernel(%arg0: i32, %arg1: memref<8x512xf32, #tpu.memory_space<vmem>>, %arg2: memref<512x128xf32, #tpu.memory_space<vmem>>, %arg3: memref<1x128xf32, #tpu.memory_space<vmem>>, %arg4: memref<8x128xf32, #tpu.memory_space<vmem>>) attributes {dimension_semantics = [#tpu.dimension_semantics<parallel>], iteration_bounds = array<i64: 1>, scalar_prefetch = 0 : i64, scratch_operands = 0 : i64, tpu.core_type = #tpu.core_type<tc>, window_params = [{transform_indices = @transform_0, window_bounds = array<i64: 8, 512>}, {pipeline_mode = #tpu.pipeline_mode<synchronous>, transform_indices = @transform_1, window_bounds = array<i64: 512, 128>}, {pipeline_mode = #tpu.pipeline_mode<synchronous>, transform_indices = @transform_2, window_bounds = array<i64: 1, 128>}, {transform_indices = @transform_3, window_bounds = array<i64: 8, 128>}]} {
    %c0 = arith.constant 0 : index
    %c0_0 = arith.constant 0 : index
    %0 = vector.load %arg1[%c0, %c0_0] : memref<8x512xf32, #tpu.memory_space<vmem>>, vector<8x512xf32>
    %c0_1 = arith.constant 0 : index
    %c0_2 = arith.constant 0 : index
    %1 = vector.load %arg2[%c0_1, %c0_2] : memref<512x128xf32, #tpu.memory_space<vmem>>, vector<512x128xf32>
    %cst = arith.constant dense<0.000000e+00> : vector<8x128xf32>
    %2 = tpu.matmul %0, %1, %cst {dimension_numbers = #tpu.dot_dimension_numbers<[1], [0], [0], [1], [0, 0, 1, 1], [], []>} : vector<8x512xf32>, vector<512x128xf32>, vector<8x128xf32> -> vector<8x128xf32>
    %c0_3 = arith.constant 0 : index
    %c0_4 = arith.constant 0 : index
    %3 = vector.load %arg3[%c0_3, %c0_4] : memref<1x128xf32, #tpu.memory_space<vmem>>, vector<1x128xf32>
    %4 = vector.broadcast %3 : vector<1x128xf32> to vector<8x128xf32>
    %5 = arith.addf %2, %4 : vector<8x128xf32>
    %cst_5 = arith.constant 0.000000e+00 : f32
    %6 = vector.broadcast %cst_5 : f32 to vector<8x128xf32>
    %7 = arith.maximumf %5, %6 : vector<8x128xf32>
    %c0_6 = arith.constant 0 : index
    %c0_7 = arith.constant 0 : index
    %8 = vector.load %arg4[%c0_6, %c0_7] : memref<8x128xf32, #tpu.memory_space<vmem>>, vector<8x128xf32>
    tpu.vector_store %arg4[%c0_6, %c0_7], %7 {strides = array<i32>} : memref<8x128xf32, #tpu.memory_space<vmem>>, vector<8x128xf32>,
    return
  }
  func.func @transform_0(%arg0: i32) -> (i32, i32) {
    %c0_i32 = arith.constant 0 : i32
    %c0_i32_0 = arith.constant 0 : i32
    return %arg0, %c0_i32 : i32, i32
  }
  func.func @transform_1(%arg0: i32) -> (i32, i32) {
    %c0_i32 = arith.constant 0 : i32
    %c0_i32_0 = arith.constant 0 : i32
    %c0_i32_1 = arith.constant 0 : i32
    return %c0_i32, %c0_i32_0 : i32, i32
  }
  func.func @transform_2(%arg0: i32) -> (i32, i32) {
    %c0_i32 = arith.constant 0 : i32
    %c0_i32_0 = arith.constant 0 : i32
    %c0_i32_1 = arith.constant 0 : i32
    return %c0_i32, %c0_i32_0 : i32, i32
  }
  func.func @transform_3(%arg0: i32) -> (i32, i32) {
    %c0_i32 = arith.constant 0 : i32
    %c0_i32_0 = arith.constant 0 : i32
    return %arg0, %c0_i32 : i32, i32
  }
}

module attributes {stable_mosaic.version = 11 : i64} {
  func.func @_fc_tail_kernel(%arg0: i32, %arg1: memref<8x128xf32, #tpu.memory_space<vmem>>, %arg2: memref<128x128xf32, #tpu.memory_space<vmem>>, %arg3: memref<1x128xf32, #tpu.memory_space<vmem>>, %arg4: memref<128x128xf32, #tpu.memory_space<vmem>>, %arg5: memref<1x128xf32, #tpu.memory_space<vmem>>, %arg6: memref<8x128xf32, #tpu.memory_space<vmem>>) attributes {dimension_semantics = [#tpu.dimension_semantics<parallel>], iteration_bounds = array<i64: 1>, scalar_prefetch = 0 : i64, scratch_operands = 0 : i64, tpu.core_type = #tpu.core_type<tc>, window_params = [{transform_indices = @transform_0, window_bounds = array<i64: 8, 128>}, {pipeline_mode = #tpu.pipeline_mode<synchronous>, transform_indices = @transform_1, window_bounds = array<i64: 128, 128>}, {pipeline_mode = #tpu.pipeline_mode<synchronous>, transform_indices = @transform_2, window_bounds = array<i64: 1, 128>}, {pipeline_mode = #tpu.pipeline_mode<synchronous>, transform_indices = @transform_3, window_bounds = array<i64: 128, 128>}, {pipeline_mode = #tpu.pipeline_mode<synchronous>, transform_indices = @transform_4, window_bounds = array<i64: 1, 128>}, {transform_indices = @transform_5, window_bounds = array<i64: 8, 128>}]} {
    %c0 = arith.constant 0 : index
    %c0_0 = arith.constant 0 : index
    %0 = vector.load %arg1[%c0, %c0_0] : memref<8x128xf32, #tpu.memory_space<vmem>>, vector<8x128xf32>
    %c0_1 = arith.constant 0 : index
    %c0_2 = arith.constant 0 : index
    %1 = vector.load %arg2[%c0_1, %c0_2] : memref<128x128xf32, #tpu.memory_space<vmem>>, vector<128x128xf32>
    %cst = arith.constant dense<0.000000e+00> : vector<8x128xf32>
    %2 = tpu.matmul %0, %1, %cst {dimension_numbers = #tpu.dot_dimension_numbers<[1], [0], [0], [1], [0, 0, 1, 1], [], []>} : vector<8x128xf32>, vector<128x128xf32>, vector<8x128xf32> -> vector<8x128xf32>
    %c0_3 = arith.constant 0 : index
    %c0_4 = arith.constant 0 : index
    %3 = vector.load %arg3[%c0_3, %c0_4] : memref<1x128xf32, #tpu.memory_space<vmem>>, vector<1x128xf32>
    %4 = vector.broadcast %3 : vector<1x128xf32> to vector<8x128xf32>
    %5 = arith.addf %2, %4 : vector<8x128xf32>
    %cst_5 = arith.constant 0.000000e+00 : f32
    %6 = vector.broadcast %cst_5 : f32 to vector<8x128xf32>
    %7 = arith.maximumf %5, %6 : vector<8x128xf32>
    %c0_6 = arith.constant 0 : index
    %c0_7 = arith.constant 0 : index
    %8 = vector.load %arg4[%c0_6, %c0_7] : memref<128x128xf32, #tpu.memory_space<vmem>>, vector<128x128xf32>
    %cst_8 = arith.constant dense<0.000000e+00> : vector<8x128xf32>
    %9 = tpu.matmul %7, %8, %cst_8 {dimension_numbers = #tpu.dot_dimension_numbers<[1], [0], [0], [1], [0, 0, 1, 1], [], []>} : vector<8x128xf32>, vector<128x128xf32>, vector<8x128xf32> -> vector<8x128xf32>
    %c0_9 = arith.constant 0 : index
    %c0_10 = arith.constant 0 : index
    %10 = vector.load %arg5[%c0_9, %c0_10] : memref<1x128xf32, #tpu.memory_space<vmem>>, vector<1x128xf32>
    %11 = vector.broadcast %10 : vector<1x128xf32> to vector<8x128xf32>
    %12 = arith.addf %9, %11 : vector<8x128xf32>
    %c0_11 = arith.constant 0 : index
    %c0_12 = arith.constant 0 : index
    %13 = vector.load %arg6[%c0_11, %c0_12] : memref<8x128xf32, #tpu.memory_space<vmem>>, vector<8x128xf32>
    tpu.vector_store %arg6[%c0_11, %c0_12], %12 {strides = array<i32>} : memref<8x128xf32, #tpu.memory_space<vmem>>, vector<8x128xf32>,
    return
  }
  func.func @transform_0(%arg0: i32) -> (i32, i32) {
    %c0_i32 = arith.constant 0 : i32
    %c0_i32_0 = arith.constant 0 : i32
    return %arg0, %c0_i32 : i32, i32
  }
  func.func @transform_1(%arg0: i32) -> (i32, i32) {
    %c0_i32 = arith.constant 0 : i32
    %c0_i32_0 = arith.constant 0 : i32
    %c0_i32_1 = arith.constant 0 : i32
    return %c0_i32, %c0_i32_0 : i32, i32
  }
  func.func @transform_2(%arg0: i32) -> (i32, i32) {
    %c0_i32 = arith.constant 0 : i32
    %c0_i32_0 = arith.constant 0 : i32
    %c0_i32_1 = arith.constant 0 : i32
    return %c0_i32, %c0_i32_0 : i32, i32
  }
  func.func @transform_3(%arg0: i32) -> (i32, i32) {
    %c0_i32 = arith.constant 0 : i32
    %c0_i32_0 = arith.constant 0 : i32
    %c0_i32_1 = arith.constant 0 : i32
    return %c0_i32, %c0_i32_0 : i32, i32
  }
  func.func @transform_4(%arg0: i32) -> (i32, i32) {
    %c0_i32 = arith.constant 0 : i32
    %c0_i32_0 = arith.constant 0 : i32
    %c0_i32_1 = arith.constant 0 : i32
    return %c0_i32, %c0_i32_0 : i32, i32
  }
  func.func @transform_5(%arg0: i32) -> (i32, i32) {
    %c0_i32 = arith.constant 0 : i32
    %c0_i32_0 = arith.constant 0 : i32
    return %arg0, %c0_i32 : i32, i32
  }
}

</mosaic_0001>

<llo_original>
// kernel: lenet5_forward.5
$region0: #{lenet5_forward.5}
  #allocation0 [shape = 'u32[]', space=smem, size = 0x4, offset = 0x4, fixed_abs, tag = 'smem constant byte address 0x4 - core index']
  #allocation1 [shape = 'u32[144,128]{1,0:T(1,128)}', space=vmem, size = 0x12000, scoped, tag = 'internal scratch']
  %s0 = inlined_call_operand.vmem [shape: f32[3328,128], index: 0, kind: input, shape index: {}]
  %s1 = inlined_call_operand.vmem [shape: f32[128,128], index: 1, kind: input, shape index: {}]
  %s2 = inlined_call_operand.vmem [shape: f32[1,128], index: 2, kind: input, shape index: {}]
  %s3 = inlined_call_operand.vmem [shape: f32[3328,128], index: 3, kind: output, shape index: {}]
  %s4 = sld [smem:[#allocation0]]
  $region45: #{lenet5_forward.5} parent=0
    _
  %s6 = ssub.s32 1, %s4
  %s7 = scalar_select 0, %s6, %s4
  loop: start=0, step=1, limit=15
  $region2: #{lenet5_forward.5} parent=0 // loop_pre_header
    _
  $region3: #{lenet5_forward.5} parent=0 // loop_header
    %s9 = sphi 0, %s13
    %p10 = scmp.ge.s32.totalorder %s9, 15
    %s19 = sphi 0, %s21
    %s22 = sphi 0, %s19
    %s23 = sphi 0, %s22
    %s39 = sphi 0, %s23
    %s43 = sphi 0, %s43
    %s45 = sphi 0, %s43
    %s46 = sphi 0, %s45
    %s60 = sphi 0, %s46
    %s64 = sphi 0, %s64
    %s66 = sphi 0, %s64
    %s67 = sphi 0, %s66
    %s81 = sphi 0, %s67
    %s87 = sphi 0, %s89
    %s90 = sphi 0, %s87
    %s91 = sphi 0, %s90
    %s107 = sphi 0, %s91
  $region4: #{lenet5_forward.5} parent=0 // loop_header_branch
    %12 = sbr.rel (%p10) target = $region8
  $region5: #{lenet5_forward.5} parent=0 // loop_body
    %s14 = ssub.s32 %s9, 1
    %s15 = ssub.s32 %s9, 2
    %s16 = sadd.s32 %s9, 1
    %s17 = ssub.s32 %s9, %s16
    %p18 = scmp.eq.s32.totalorder %s17, 0
    %s20 = sadd.s32 %s19, 1
    %s21 = scalar_select %p18, %s19, %s20
    %p24 = pneg %p18
    %p25 = scmp.eq.s32.totalorder %s9, 12
    %p26 = por %p24, %p25
    %p27 = scmp.ne.s32.totalorder %s19, %s22
    %p28 = scmp.eq.s32.totalorder %s9, 0
    %p29 = por %p27, %p28
    %p30 = scmp.ne.s32.totalorder %s19, %s22
    %p31 = scmp.eq.s32.totalorder %s14, 12
    %p32 = por %p30, %p31
    %p33 = scmp.ne.s32.totalorder %s22, %s23
    %p34 = scmp.eq.s32.totalorder %s14, 0
    %p35 = por %p33, %p34
    %p36 = scmp.ne.s32.totalorder %s22, %s23
    %p37 = scmp.eq.s32.totalorder %s15, 12
    %p38 = por %p36, %p37
    %p40 = scmp.ne.s32.totalorder %s23, %s39
    %p41 = scmp.eq.s32.totalorder %s15, 0
    %p42 = por %p40, %p41
    %s44 = sadd.s32 %s43, 1
    %p47 = scmp.eq.s32.totalorder %s9, 12
    %p48 = scmp.ne.s32.totalorder %s43, %s45
    %p49 = scmp.eq.s32.totalorder %s9, 0
    %p50 = por %p48, %p49
    %p51 = scmp.ne.s32.totalorder %s43, %s45
    %p52 = scmp.eq.s32.totalorder %s14, 12
    %p53 = por %p51, %p52
    %p54 = scmp.ne.s32.totalorder %s45, %s46
    %p55 = scmp.eq.s32.totalorder %s14, 0
    %p56 = por %p54, %p55
    %p57 = scmp.ne.s32.totalorder %s45, %s46
    %p58 = scmp.eq.s32.totalorder %s15, 12
    %p59 = por %p57, %p58
    %p61 = scmp.ne.s32.totalorder %s46, %s60
    %p62 = scmp.eq.s32.totalorder %s15, 0
    %p63 = por %p61, %p62
    %s65 = sadd.s32 %s64, 1
    %p68 = scmp.eq.s32.totalorder %s9, 12
    %p69 = scmp.ne.s32.totalorder %s64, %s66
    %p70 = scmp.eq.s32.totalorder %s9, 0
    %p71 = por %p69, %p70
    %p72 = scmp.ne.s32.totalorder %s64, %s66
    %p73 = scmp.eq.s32.totalorder %s14, 12
    %p74 = por %p72, %p73
    %p75 = scmp.ne.s32.totalorder %s66, %s67
    %p76 = scmp.eq.s32.totalorder %s14, 0
    %p77 = por %p75, %p76
    %p78 = scmp.ne.s32.totalorder %s66, %s67
    %p79 = scmp.eq.s32.totalorder %s15, 12
    %p80 = por %p78, %p79
    %p82 = scmp.ne.s32.totalorder %s67, %s81
    %p83 = scmp.eq.s32.totalorder %s15, 0
    %p84 = por %p82, %p83
    %s85 = ssub.s32 %s9, %s16
    %p86 = scmp.eq.s32.totalorder %s85, 0
    %s88 = sadd.s32 %s87, 1
    %s89 = scalar_select %p86, %s87, %s88
    %p92 = pneg %p86
    %p93 = scmp.eq.s32.totalorder %s9, 12
    %p94 = por %p92, %p93
    %p95 = scmp.ne.s32.totalorder %s87, %s90
    %p96 = scmp.eq.s32.totalorder %s9, 0
    %p97 = por %p95, %p96
    %p98 = scmp.ne.s32.totalorder %s87, %s90
    %p99 = scmp.eq.s32.totalorder %s14, 12
    %p100 = por %p98, %p99
    %p101 = scmp.ne.s32.totalorder %s90, %s91
    %p102 = scmp.eq.s32.totalorder %s14, 0
    %p103 = por %p101, %p102
    %p104 = scmp.ne.s32.totalorder %s90, %s91
    %p105 = scmp.eq.s32.totalorder %s15, 12
    %p106 = por %p104, %p105
    %p108 = scmp.ne.s32.totalorder %s91, %s107
    %p109 = scmp.eq.s32.totalorder %s15, 0
    %p110 = por %p108, %p109
    %p111 = scmp.le.s32.totalorder 1, %s9
    %p112 = scmp.lt.s32.totalorder %s9, 14
    %p113 = pnand %p111, %p112
    %p114 = pneg %p113
    // Predicated region
    $region9: #{lenet5_forward.5} parent=5 // pred_check
      _
    $region10: #{lenet5_forward.5} parent=5 // pred_check_branch
      %116 = sbr.rel (%p113) target = $region12
    $region11: #{lenet5_forward.5} parent=5 // pred_region
      %s117 = ssub.s32 %s9, 1
      // Predicated region
      $region13: #{lenet5_forward.5} parent=11 // pred_check
        %p118 = pneg %p56
      $region14: #{lenet5_forward.5} parent=11 // pred_check_branch
        %120 = sbr.rel (%p118) target = $region16
      $region15: #{lenet5_forward.5} parent=11 // pred_region
        _
      $region16: #{lenet5_forward.5} parent=11 // pred_fallthru
        _
      // Predicated region
      $region17: #{lenet5_forward.5} parent=11 // pred_check
        %p121 = pneg %p77
      $region18: #{lenet5_forward.5} parent=11 // pred_check_branch
        %123 = sbr.rel (%p121) target = $region20
      $region19: #{lenet5_forward.5} parent=11 // pred_region
        _
      $region20: #{lenet5_forward.5} parent=11 // pred_fallthru
        _
    $region12: #{lenet5_forward.5} parent=5 // pred_fallthru
      _
    %p124 = scmp.lt.s32.totalorder %s9, 13
    // Predicated region
    $region21: #{lenet5_forward.5} parent=5 // pred_check
      %p125 = pneg %p124
    $region22: #{lenet5_forward.5} parent=5 // pred_check_branch
      %127 = sbr.rel (%p125) target = $region24
    $region23: #{lenet5_forward.5} parent=5 // pred_region
      // Predicated region
      $region25: #{lenet5_forward.5} parent=23 // pred_check
        %p128 = pneg %p29
      $region26: #{lenet5_forward.5} parent=23 // pred_check_branch
        %130 = sbr.rel (%p128) target = $region28
      $region27: #{lenet5_forward.5} parent=23 // pred_region
        %s131 = smul.u32 32, %s9
        %p132 = scmp.lt.s32.totalorder %s131, 415
        %s133 = scalar_select %p132, %s131, 415
        %s134 = smul.addr %s133, 8
        %s135 = scalar_lea.vmem %s0, %s134
        %s136 = smul.u32 32, %s9
      $region28: #{lenet5_forward.5} parent=23 // pred_fallthru
        _
    $region24: #{lenet5_forward.5} parent=5 // pred_fallthru
      _
    %p137 = scmp.le.s32.totalorder 1, %s9
    %p138 = scmp.lt.s32.totalorder %s9, 14
    %p139 = pnand %p137, %p138
    %p140 = pneg %p139
    // Predicated region
    $region29: #{lenet5_forward.5} parent=5 // pred_check
      _
    $region30: #{lenet5_forward.5} parent=5 // pred_check_branch
      %142 = sbr.rel (%p139) target = $region32
    $region31: #{lenet5_forward.5} parent=5 // pred_region
      %s143 = ssub.s32 %s9, 1
      %s144 = smul.u32 32, %s14
      %p145 = scmp.lt.s32.totalorder %s144, 415
      %s146 = scalar_select %p145, %s144, 415
      %s147 = smul.addr %s146, 8
      %s148 = scalar_lea.vmem %s0, %s147
      %p149 = pneg %p35
      %p150 = pneg %p32
      %p151 = pneg %p56
      %p152 = pneg %p53
      %p153 = pneg %p77
      %p154 = pneg %p74
      %p155 = pneg %p103
      %p156 = pneg %p100
      %s157 = smul.u32 32, %s14
      %p158 = scmp.lt.s32.totalorder %s157, 415
      %s159 = scalar_select %p158, %s157, 415
      %s160 = smul.addr %s159, 8
      %s161 = scalar_lea.vmem %s3, %s160
      %s162 = smul.u32 32, %s14
      %p163 = scmp.lt.s32.totalorder %s162, 415
      %s164 = scalar_select %p163, %s162, 415
      %s165 = smul.addr %s164, 8
      %s166 = scalar_lea.vmem %s0, %s165
      %s167 = smul.u32 32, %s14
      %s168 = smul.u32 32, %s14
      %p169 = scmp.lt.s32.totalorder %s168, 415
      %s170 = scalar_select %p169, %s168, 415
      %s171 = smul.addr %s170, 8
      %s172 = scalar_lea.vmem %s3, %s171
      %s173 = smul.u32 32, %s14
      %v174 = vld [vmem:[%s166] sm:$0xff]
      %v175 = vld [vmem:[%s166 + $0x8] sm:$0xff]
      %v176 = vld [vmem:[%s166 + $0x10] sm:$0xff]
      %v177 = vld [vmem:[%s166 + $0x18] sm:$0xff]
      %v178 = vld [vmem:[%s166 + $0x20] sm:$0xff]
      %v179 = vld [vmem:[%s166 + $0x28] sm:$0xff]
      %v180 = vld [vmem:[%s166 + $0x30] sm:$0xff]
      %v181 = vld [vmem:[%s166 + $0x38] sm:$0xff]
      %v182 = vld [vmem:[%s166 + $0x40] sm:$0xff]
      %v183 = vld [vmem:[%s166 + $0x48] sm:$0xff]
      %v184 = vld [vmem:[%s166 + $0x50] sm:$0xff]
      %v185 = vld [vmem:[%s166 + $0x58] sm:$0xff]
      %v186 = vld [vmem:[%s166 + $0x60] sm:$0xff]
      %v187 = vld [vmem:[%s166 + $0x68] sm:$0xff]
      %v188 = vld [vmem:[%s166 + $0x70] sm:$0xff]
      %v189 = vld [vmem:[%s166 + $0x78] sm:$0xff]
      %v190 = vld [vmem:[%s166 + $0x80] sm:$0xff]
      %v191 = vld [vmem:[%s166 + $0x88] sm:$0xff]
      %v192 = vld [vmem:[%s166 + $0x90] sm:$0xff]
      %v193 = vld [vmem:[%s166 + $0x98] sm:$0xff]
      %v194 = vld [vmem:[%s166 + $0xa0] sm:$0xff]
      %v195 = vld [vmem:[%s166 + $0xa8] sm:$0xff]
      %v196 = vld [vmem:[%s166 + $0xb0] sm:$0xff]
      %v197 = vld [vmem:[%s166 + $0xb8] sm:$0xff]
      %v198 = vld [vmem:[%s166 + $0xc0] sm:$0xff]
      %v199 = vld [vmem:[%s166 + $0xc8] sm:$0xff]
      %v200 = vld [vmem:[%s166 + $0xd0] sm:$0xff]
      %v201 = vld [vmem:[%s166 + $0xd8] sm:$0xff]
      %v202 = vld [vmem:[%s166 + $0xe0] sm:$0xff]
      %v203 = vld [vmem:[%s166 + $0xe8] sm:$0xff]
      %v204 = vld [vmem:[%s166 + $0xf0] sm:$0xff]
      %v205 = vld [vmem:[%s166 + $0xf8] sm:$0xff]
      %v206 = vld [vmem:[%s1] sm:$0xff]
      %v207 = vld [vmem:[%s1 + $0x8] sm:$0xff]
      %v208 = vld [vmem:[%s1 + $0x10] sm:$0xff]
      %v209 = vld [vmem:[%s1 + $0x18] sm:$0xff]
      %v210 = vld [vmem:[%s1 + $0x20] sm:$0xff]
      %v211 = vld [vmem:[%s1 + $0x28] sm:$0xff]
      %v212 = vld [vmem:[%s1 + $0x30] sm:$0xff]
      %v213 = vld [vmem:[%s1 + $0x38] sm:$0xff]
      %v214 = vld [vmem:[%s1 + $0x40] sm:$0xff]
      %v215 = vld [vmem:[%s1 + $0x48] sm:$0xff]
      %v216 = vld [vmem:[%s1 + $0x50] sm:$0xff]
      %v217 = vld [vmem:[%s1 + $0x58] sm:$0xff]
      %v218 = vld [vmem:[%s1 + $0x60] sm:$0xff]
      %v219 = vld [vmem:[%s1 + $0x68] sm:$0xff]
      %v220 = vld [vmem:[%s1 + $0x70] sm:$0xff]
      %v221 = vld [vmem:[%s1 + $0x78] sm:$0xff]
      %v222 = vld [vmem:[%s2] sm:$0x1]
      %v224 = vlaneseq
      %v225 = vshrl.u32 %v224, 7
      %v226 = vsub.s32 0, %v225
      %v227 = vrot.slane %v222, %v226
      %229 = vmatprep.subr.mxu0 0.0
      %230 = vmatpush1.msra.mxu0 %v221
      %231 = vmatprep.subr.mxu0 0.0
      %232 = vmatpush1.msra.mxu0 %v220
      %233 = vmatprep.subr.mxu0 0.0
      %234 = vmatpush1.msra.mxu0 %v219
      %235 = vmatprep.subr.mxu0 0.0
      %236 = vmatpush1.msra.mxu0 %v218
      %237 = vmatprep.subr.mxu0 0.0
      %238 = vmatpush1.msra.mxu0 %v217
      %239 = vmatprep.subr.mxu0 0.0
      %240 = vmatpush1.msra.mxu0 %v216
      %241 = vmatprep.subr.mxu0 0.0
      %242 = vmatpush1.msra.mxu0 %v215
      %243 = vmatprep.subr.mxu0 0.0
      %244 = vmatpush1.msra.mxu0 %v214
      %245 = vmatprep.subr.mxu0 0.0
      %246 = vmatpush1.msra.mxu0 %v213
      %247 = vmatprep.subr.mxu0 0.0
      %248 = vmatpush1.msra.mxu0 %v212
      %249 = vmatprep.subr.mxu0 0.0
      %250 = vmatpush1.msra.mxu0 %v211
      %251 = vmatprep.subr.mxu0 0.0
      %252 = vmatpush1.msra.mxu0 %v210
      %253 = vmatprep.subr.mxu0 0.0
      %254 = vmatpush1.msra.mxu0 %v209
      %255 = vmatprep.subr.mxu0 0.0
      %256 = vmatpush1.msra.mxu0 %v208
      %257 = vmatprep.subr.mxu0 0.0
      %258 = vmatpush1.msra.mxu0 %v207
      %259 = vmatprep.subr.mxu0 0.0
      %260 = vmatpush1.msra.mxu0 %v206
      %261 = vmatprep.subr.mxu0 0.0
      %262 = vmatpush2.msra.mxu0 0.0
      %263 = vmatprep.subr.mxu0 0.0
      %264 = vmatpush2.msra.mxu0 0.0
      %265 = vmatprep.subr.mxu0 0.0
      %266 = vmatpush2.msra.mxu0 0.0
      %267 = vmatprep.subr.mxu0 0.0
      %268 = vmatpush2.msra.mxu0 0.0
      %269 = vmatprep.subr.mxu0 0.0
      %270 = vmatpush2.msra.mxu0 0.0
      %271 = vmatprep.subr.mxu0 0.0
      %272 = vmatpush2.msra.mxu0 0.0
      %273 = vmatprep.subr.mxu0 0.0
      %274 = vmatpush2.msra.mxu0 0.0
      %275 = vmatprep.subr.mxu0 0.0
      %276 = vmatpush2.msra.mxu0 0.0
      %277 = vmatprep.subr.mxu0 0.0
      %278 = vmatpush2.msra.mxu0 0.0
      %279 = vmatprep.subr.mxu0 0.0
      %280 = vmatpush2.msra.mxu0 0.0
      %281 = vmatprep.subr.mxu0 0.0
      %282 = vmatpush2.msra.mxu0 0.0
      %283 = vmatprep.subr.mxu0 0.0
      %284 = vmatpush2.msra.mxu0 0.0
      %285 = vmatprep.subr.mxu0 0.0
      %286 = vmatpush2.msra.mxu0 0.0
      %287 = vmatprep.subr.mxu0 0.0
      %288 = vmatpush2.msra.mxu0 0.0
      %289 = vmatprep.subr.mxu0 0.0
      %290 = vmatpush2.msra.mxu0 0.0
      %291 = vmatprep.subr.mxu0 0.0
      %292 = vmatpush2.msra.mxu0 0.0
      %293 = vmatprep.mubr.f32.mxu0 0.0
      %294 = vmatmul.mubr.f32.gmra.mxu0 %v174
      %v295 = vpop.f32.mrf.mxu0
      %v296 = vadd.f32 %v227, %v295
      %v297 = vpop.f32.mrf.mxu0
      %298 = vmatprep.mubr.f32.mxu0 0.0
      %299 = vmatmul.mubr.f32.gmra.mxu0 %v175
      %v300 = vpop.f32.mrf.mxu0
      %v301 = vadd.f32 %v227, %v300
      %v302 = vpop.f32.mrf.mxu0
      %303 = vmatprep.mubr.f32.mxu0 0.0
      %304 = vmatmul.mubr.f32.gmra.mxu0 %v176
      %v305 = vpop.f32.mrf.mxu0
      %v306 = vadd.f32 %v227, %v305
      %v307 = vpop.f32.mrf.mxu0
      %308 = vmatprep.mubr.f32.mxu0 0.0
      %309 = vmatmul.mubr.f32.gmra.mxu0 %v177
      %v310 = vpop.f32.mrf.mxu0
      %v311 = vadd.f32 %v227, %v310
      %v312 = vpop.f32.mrf.mxu0
      %313 = vmatprep.mubr.f32.mxu0 0.0
      %314 = vmatmul.mubr.f32.gmra.mxu0 %v178
      %v315 = vpop.f32.mrf.mxu0
      %v316 = vadd.f32 %v227, %v315
      %v317 = vpop.f32.mrf.mxu0
      %318 = vmatprep.mubr.f32.mxu0 0.0
      %319 = vmatmul.mubr.f32.gmra.mxu0 %v179
      %v320 = vpop.f32.mrf.mxu0
      %v321 = vadd.f32 %v227, %v320
      %v322 = vpop.f32.mrf.mxu0
      %323 = vmatprep.mubr.f32.mxu0 0.0
      %324 = vmatmul.mubr.f32.gmra.mxu0 %v180
      %v325 = vpop.f32.mrf.mxu0
      %v326 = vadd.f32 %v227, %v325
      %v327 = vpop.f32.mrf.mxu0
      %328 = vmatprep.mubr.f32.mxu0 0.0
      %329 = vmatmul.mubr.f32.gmra.mxu0 %v181
      %v330 = vpop.f32.mrf.mxu0
      %v331 = vadd.f32 %v227, %v330
      %v332 = vpop.f32.mrf.mxu0
      %333 = vmatprep.mubr.f32.mxu0 0.0
      %334 = vmatmul.mubr.f32.gmra.mxu0 %v182
      %v335 = vpop.f32.mrf.mxu0
      %v336 = vadd.f32 %v227, %v335
      %v337 = vpop.f32.mrf.mxu0
      %338 = vmatprep.mubr.f32.mxu0 0.0
      %339 = vmatmul.mubr.f32.gmra.mxu0 %v183
      %v340 = vpop.f32.mrf.mxu0
      %v341 = vadd.f32 %v227, %v340
      %v342 = vpop.f32.mrf.mxu0
      %343 = vmatprep.mubr.f32.mxu0 0.0
      %344 = vmatmul.mubr.f32.gmra.mxu0 %v184
      %v345 = vpop.f32.mrf.mxu0
      %v346 = vadd.f32 %v227, %v345
      %v347 = vpop.f32.mrf.mxu0
      %348 = vmatprep.mubr.f32.mxu0 0.0
      %349 = vmatmul.mubr.f32.gmra.mxu0 %v185
      %v350 = vpop.f32.mrf.mxu0
      %v351 = vadd.f32 %v227, %v350
      %v352 = vpop.f32.mrf.mxu0
      %353 = vmatprep.mubr.f32.mxu0 0.0
      %354 = vmatmul.mubr.f32.gmra.mxu0 %v186
      %v355 = vpop.f32.mrf.mxu0
      %v356 = vadd.f32 %v227, %v355
      %v357 = vpop.f32.mrf.mxu0
      %358 = vmatprep.mubr.f32.mxu0 0.0
      %359 = vmatmul.mubr.f32.gmra.mxu0 %v187
      %v360 = vpop.f32.mrf.mxu0
      %v361 = vadd.f32 %v227, %v360
      %v362 = vpop.f32.mrf.mxu0
      %363 = vmatprep.mubr.f32.mxu0 0.0
      %364 = vmatmul.mubr.f32.gmra.mxu0 %v188
      %v365 = vpop.f32.mrf.mxu0
      %v366 = vadd.f32 %v227, %v365
      %v367 = vpop.f32.mrf.mxu0
      %368 = vmatprep.mubr.f32.mxu0 0.0
      %369 = vmatmul.mubr.f32.gmra.mxu0 %v189
      %v370 = vpop.f32.mrf.mxu0
      %v371 = vadd.f32 %v227, %v370
      %v372 = vpop.f32.mrf.mxu0
      %373 = vmatprep.mubr.f32.mxu0 0.0
      %374 = vmatmul.mubr.f32.gmra.mxu0 %v190
      %v375 = vpop.f32.mrf.mxu0
      %v376 = vadd.f32 %v227, %v375
      %v377 = vpop.f32.mrf.mxu0
      %378 = vmatprep.mubr.f32.mxu0 0.0
      %379 = vmatmul.mubr.f32.gmra.mxu0 %v191
      %v380 = vpop.f32.mrf.mxu0
      %v381 = vadd.f32 %v227, %v380
      %v382 = vpop.f32.mrf.mxu0
      %383 = vmatprep.mubr.f32.mxu0 0.0
      %384 = vmatmul.mubr.f32.gmra.mxu0 %v192
      %v385 = vpop.f32.mrf.mxu0
      %v386 = vadd.f32 %v227, %v385
      %v387 = vpop.f32.mrf.mxu0
      %388 = vmatprep.mubr.f32.mxu0 0.0
      %389 = vmatmul.mubr.f32.gmra.mxu0 %v193
      %v390 = vpop.f32.mrf.mxu0
      %v391 = vadd.f32 %v227, %v390
      %v392 = vpop.f32.mrf.mxu0
      %393 = vmatprep.mubr.f32.mxu0 0.0
      %394 = vmatmul.mubr.f32.gmra.mxu0 %v194
      %v395 = vpop.f32.mrf.mxu0
      %v396 = vadd.f32 %v227, %v395
      %v397 = vpop.f32.mrf.mxu0
      %398 = vmatprep.mubr.f32.mxu0 0.0
      %399 = vmatmul.mubr.f32.gmra.mxu0 %v195
      %v400 = vpop.f32.mrf.mxu0
      %v401 = vadd.f32 %v227, %v400
      %v402 = vpop.f32.mrf.mxu0
      %403 = vmatprep.mubr.f32.mxu0 0.0
      %404 = vmatmul.mubr.f32.gmra.mxu0 %v196
      %v405 = vpop.f32.mrf.mxu0
      %v406 = vadd.f32 %v227, %v405
      %v407 = vpop.f32.mrf.mxu0
      %408 = vmatprep.mubr.f32.mxu0 0.0
      %409 = vmatmul.mubr.f32.gmra.mxu0 %v197
      %v410 = vpop.f32.mrf.mxu0
      %v411 = vadd.f32 %v227, %v410
      %v412 = vpop.f32.mrf.mxu0
      %413 = vmatprep.mubr.f32.mxu0 0.0
      %414 = vmatmul.mubr.f32.gmra.mxu0 %v198
      %v415 = vpop.f32.mrf.mxu0
      %v416 = vadd.f32 %v227, %v415
      %v417 = vpop.f32.mrf.mxu0
      %418 = vmatprep.mubr.f32.mxu0 0.0
      %419 = vmatmul.mubr.f32.gmra.mxu0 %v199
      %v420 = vpop.f32.mrf.mxu0
      %v421 = vadd.f32 %v227, %v420
      %v422 = vpop.f32.mrf.mxu0
      %423 = vmatprep.mubr.f32.mxu0 0.0
      %424 = vmatmul.mubr.f32.gmra.mxu0 %v200
      %v425 = vpop.f32.mrf.mxu0
      %v426 = vadd.f32 %v227, %v425
      %v427 = vpop.f32.mrf.mxu0
      %428 = vmatprep.mubr.f32.mxu0 0.0
      %429 = vmatmul.mubr.f32.gmra.mxu0 %v201
      %v430 = vpop.f32.mrf.mxu0
      %v431 = vadd.f32 %v227, %v430
      %v432 = vpop.f32.mrf.mxu0
      %433 = vmatprep.mubr.f32.mxu0 0.0
      %434 = vmatmul.mubr.f32.gmra.mxu0 %v202
      %v435 = vpop.f32.mrf.mxu0
      %v436 = vadd.f32 %v227, %v435
      %v437 = vpop.f32.mrf.mxu0
      %438 = vmatprep.mubr.f32.mxu0 0.0
      %439 = vmatmul.mubr.f32.gmra.mxu0 %v203
      %v440 = vpop.f32.mrf.mxu0
      %v441 = vadd.f32 %v227, %v440
      %v442 = vpop.f32.mrf.mxu0
      %443 = vmatprep.mubr.f32.mxu0 0.0
      %444 = vmatmul.mubr.f32.gmra.mxu0 %v204
      %v445 = vpop.f32.mrf.mxu0
      %v446 = vadd.f32 %v227, %v445
      %v447 = vpop.f32.mrf.mxu0
      %448 = vmatprep.mubr.f32.mxu0 0.0
      %449 = vmatmul.mubr.f32.gmra.mxu0 %v205
      %v450 = vpop.f32.mrf.mxu0
      %v451 = vadd.f32 %v227, %v450
      %v452 = vpop.f32.mrf.mxu0
      %453 = vdwg.mxu0
      %v454 = vmax.f32 %v296, 0.0
      %v455 = vmax.f32 %v301, 0.0
      %v456 = vmax.f32 %v306, 0.0
      %v457 = vmax.f32 %v311, 0.0
      %v458 = vmax.f32 %v316, 0.0
      %v459 = vmax.f32 %v321, 0.0
      %v460 = vmax.f32 %v326, 0.0
      %v461 = vmax.f32 %v331, 0.0
      %v462 = vmax.f32 %v336, 0.0
      %v463 = vmax.f32 %v341, 0.0
      %v464 = vmax.f32 %v346, 0.0
      %v465 = vmax.f32 %v351, 0.0
      %v466 = vmax.f32 %v356, 0.0
      %v467 = vmax.f32 %v361, 0.0
      %v468 = vmax.f32 %v366, 0.0
      %v469 = vmax.f32 %v371, 0.0
      %v470 = vmax.f32 %v376, 0.0
      %v471 = vmax.f32 %v381, 0.0
      %v472 = vmax.f32 %v386, 0.0
      %v473 = vmax.f32 %v391, 0.0
      %v474 = vmax.f32 %v396, 0.0
      %v475 = vmax.f32 %v401, 0.0
      %v476 = vmax.f32 %v406, 0.0
      %v477 = vmax.f32 %v411, 0.0
      %v478 = vmax.f32 %v416, 0.0
      %v479 = vmax.f32 %v421, 0.0
      %v480 = vmax.f32 %v426, 0.0
      %v481 = vmax.f32 %v431, 0.0
      %v482 = vmax.f32 %v436, 0.0
      %v483 = vmax.f32 %v441, 0.0
      %v484 = vmax.f32 %v446, 0.0
      %v485 = vmax.f32 %v451, 0.0
      %486 = vst [vmem:[%s172] sm:$0xff] %v454
      %487 = vst [vmem:[%s172 + $0x8] sm:$0xff] %v455
      %488 = vst [vmem:[%s172 + $0x10] sm:$0xff] %v456
      %489 = vst [vmem:[%s172 + $0x18] sm:$0xff] %v457
      %490 = vst [vmem:[%s172 + $0x20] sm:$0xff] %v458
      %491 = vst [vmem:[%s172 + $0x28] sm:$0xff] %v459
      %492 = vst [vmem:[%s172 + $0x30] sm:$0xff] %v460
      %493 = vst [vmem:[%s172 + $0x38] sm:$0xff] %v461
      %494 = vst [vmem:[%s172 + $0x40] sm:$0xff] %v462
      %495 = vst [vmem:[%s172 + $0x48] sm:$0xff] %v463
      %496 = vst [vmem:[%s172 + $0x50] sm:$0xff] %v464
      %497 = vst [vmem:[%s172 + $0x58] sm:$0xff] %v465
      %498 = vst [vmem:[%s172 + $0x60] sm:$0xff] %v466
      %499 = vst [vmem:[%s172 + $0x68] sm:$0xff] %v467
      %500 = vst [vmem:[%s172 + $0x70] sm:$0xff] %v468
      %501 = vst [vmem:[%s172 + $0x78] sm:$0xff] %v469
      %502 = vst [vmem:[%s172 + $0x80] sm:$0xff] %v470
      %503 = vst [vmem:[%s172 + $0x88] sm:$0xff] %v471
      %504 = vst [vmem:[%s172 + $0x90] sm:$0xff] %v472
      %505 = vst [vmem:[%s172 + $0x98] sm:$0xff] %v473
      %506 = vst [vmem:[%s172 + $0xa0] sm:$0xff] %v474
      %507 = vst [vmem:[%s172 + $0xa8] sm:$0xff] %v475
      %508 = vst [vmem:[%s172 + $0xb0] sm:$0xff] %v476
      %509 = vst [vmem:[%s172 + $0xb8] sm:$0xff] %v477
      %510 = vst [vmem:[%s172 + $0xc0] sm:$0xff] %v478
      %511 = vst [vmem:[%s172 + $0xc8] sm:$0xff] %v479
      %512 = vst [vmem:[%s172 + $0xd0] sm:$0xff] %v480
      %513 = vst [vmem:[%s172 + $0xd8] sm:$0xff] %v481
      %514 = vst [vmem:[%s172 + $0xe0] sm:$0xff] %v482
      %515 = vst [vmem:[%s172 + $0xe8] sm:$0xff] %v483
      %516 = vst [vmem:[%s172 + $0xf0] sm:$0xff] %v484
      %517 = vst [vmem:[%s172 + $0xf8] sm:$0xff] %v485
      %s518 = smul.u32 32, %s14
      %p519 = scmp.lt.s32.totalorder %s518, 415
      %s520 = scalar_select %p519, %s518, 415
      %s521 = smul.addr %s520, 8
      %s522 = scalar_lea.vmem %s3, %s521
      // Predicated region
      $region33: #{lenet5_forward.5} parent=31 // pred_check
        %p523 = pneg %p100
      $region34: #{lenet5_forward.5} parent=31 // pred_check_branch
        %525 = sbr.rel (%p523) target = $region36
      $region35: #{lenet5_forward.5} parent=31 // pred_region
        %s526 = smul.u32 32, %s14
      $region36: #{lenet5_forward.5} parent=31 // pred_fallthru
        _
    $region32: #{lenet5_forward.5} parent=5 // pred_fallthru
      _
    %p527 = scmp.le.s32.totalorder 2, %s9
    // Predicated region
    $region37: #{lenet5_forward.5} parent=5 // pred_check
      %p528 = pneg %p527
    $region38: #{lenet5_forward.5} parent=5 // pred_check_branch
      %530 = sbr.rel (%p528) target = $region40
    $region39: #{lenet5_forward.5} parent=5 // pred_region
      %s531 = ssub.s32 %s9, 2
      // Predicated region
      $region41: #{lenet5_forward.5} parent=39 // pred_check
        %p532 = pneg %p106
      $region42: #{lenet5_forward.5} parent=39 // pred_check_branch
        %534 = sbr.rel (%p532) target = $region44
      $region43: #{lenet5_forward.5} parent=39 // pred_region
        %s535 = smul.u32 32, %s15
        %p536 = scmp.lt.s32.totalorder %s535, 415
        %s537 = scalar_select %p536, %s535, 415
        %s538 = smul.addr %s537, 8
        %s539 = scalar_lea.vmem %s3, %s538
      $region44: #{lenet5_forward.5} parent=39 // pred_fallthru
        _
    $region40: #{lenet5_forward.5} parent=5 // pred_fallthru
      _
  $region6: #{lenet5_forward.5} parent=0 // loop_footer
    %s13 = sadd.s32 1, %s9
  $region7: #{lenet5_forward.5} parent=0 // loop_footer_branch
    %8 = sbr.rel target = $region3
  $region8: #{lenet5_forward.5} parent=0 // loop_exit
    _

// kernel: lenet5_forward.6
$region0: #{lenet5_forward.6}
  #allocation0 [shape = 'u32[]', space=smem, size = 0x4, offset = 0x4, fixed_abs, tag = 'smem constant byte address 0x4 - core index']
  #allocation1 [shape = 'u32[144,128]{1,0:T(1,128)}', space=vmem, size = 0x12000, scoped, tag = 'internal scratch']
  %s0 = inlined_call_operand.vmem [shape: f32[512,256], index: 0, kind: input, shape index: {}]
  %s1 = inlined_call_operand.vmem [shape: f32[256,128], index: 1, kind: input, shape index: {}]
  %s2 = inlined_call_operand.vmem [shape: f32[1,128], index: 2, kind: input, shape index: {}]
  %s3 = inlined_call_operand.vmem [shape: f32[512,128], index: 3, kind: output, shape index: {}]
  %s4 = sld [smem:[#allocation0]]
  $region45: #{lenet5_forward.6} parent=0
    _
  %s6 = ssub.s32 1, %s4
  %s7 = scalar_select 0, %s6, %s4
  loop: start=0, step=1, limit=4
  $region2: #{lenet5_forward.6} parent=0 // loop_pre_header
    _
  $region3: #{lenet5_forward.6} parent=0 // loop_header
    %s9 = sphi 0, %s13
    %p10 = scmp.ge.s32.totalorder %s9, 4
    %s19 = sphi 0, %s21
    %s22 = sphi 0, %s19
    %s23 = sphi 0, %s22
    %s39 = sphi 0, %s23
    %s43 = sphi 0, %s43
    %s45 = sphi 0, %s43
    %s46 = sphi 0, %s45
    %s60 = sphi 0, %s46
    %s64 = sphi 0, %s64
    %s66 = sphi 0, %s64
    %s67 = sphi 0, %s66
    %s81 = sphi 0, %s67
    %s87 = sphi 0, %s89
    %s90 = sphi 0, %s87
    %s91 = sphi 0, %s90
    %s107 = sphi 0, %s91
  $region4: #{lenet5_forward.6} parent=0 // loop_header_branch
    %12 = sbr.rel (%p10) target = $region8
  $region5: #{lenet5_forward.6} parent=0 // loop_body
    %s14 = ssub.s32 %s9, 1
    %s15 = ssub.s32 %s9, 2
    %s16 = sadd.s32 %s9, 1
    %s17 = ssub.s32 %s9, %s16
    %p18 = scmp.eq.s32.totalorder %s17, 0
    %s20 = sadd.s32 %s19, 1
    %s21 = scalar_select %p18, %s19, %s20
    %p24 = pneg %p18
    %p25 = scmp.eq.s32.totalorder %s9, 1
    %p26 = por %p24, %p25
    %p27 = scmp.ne.s32.totalorder %s19, %s22
    %p28 = scmp.eq.s32.totalorder %s9, 0
    %p29 = por %p27, %p28
    %p30 = scmp.ne.s32.totalorder %s19, %s22
    %p31 = scmp.eq.s32.totalorder %s14, 1
    %p32 = por %p30, %p31
    %p33 = scmp.ne.s32.totalorder %s22, %s23
    %p34 = scmp.eq.s32.totalorder %s14, 0
    %p35 = por %p33, %p34
    %p36 = scmp.ne.s32.totalorder %s22, %s23
    %p37 = scmp.eq.s32.totalorder %s15, 1
    %p38 = por %p36, %p37
    %p40 = scmp.ne.s32.totalorder %s23, %s39
    %p41 = scmp.eq.s32.totalorder %s15, 0
    %p42 = por %p40, %p41
    %s44 = sadd.s32 %s43, 1
    %p47 = scmp.eq.s32.totalorder %s9, 1
    %p48 = scmp.ne.s32.totalorder %s43, %s45
    %p49 = scmp.eq.s32.totalorder %s9, 0
    %p50 = por %p48, %p49
    %p51 = scmp.ne.s32.totalorder %s43, %s45
    %p52 = scmp.eq.s32.totalorder %s14, 1
    %p53 = por %p51, %p52
    %p54 = scmp.ne.s32.totalorder %s45, %s46
    %p55 = scmp.eq.s32.totalorder %s14, 0
    %p56 = por %p54, %p55
    %p57 = scmp.ne.s32.totalorder %s45, %s46
    %p58 = scmp.eq.s32.totalorder %s15, 1
    %p59 = por %p57, %p58
    %p61 = scmp.ne.s32.totalorder %s46, %s60
    %p62 = scmp.eq.s32.totalorder %s15, 0
    %p63 = por %p61, %p62
    %s65 = sadd.s32 %s64, 1
    %p68 = scmp.eq.s32.totalorder %s9, 1
    %p69 = scmp.ne.s32.totalorder %s64, %s66
    %p70 = scmp.eq.s32.totalorder %s9, 0
    %p71 = por %p69, %p70
    %p72 = scmp.ne.s32.totalorder %s64, %s66
    %p73 = scmp.eq.s32.totalorder %s14, 1
    %p74 = por %p72, %p73
    %p75 = scmp.ne.s32.totalorder %s66, %s67
    %p76 = scmp.eq.s32.totalorder %s14, 0
    %p77 = por %p75, %p76
    %p78 = scmp.ne.s32.totalorder %s66, %s67
    %p79 = scmp.eq.s32.totalorder %s15, 1
    %p80 = por %p78, %p79
    %p82 = scmp.ne.s32.totalorder %s67, %s81
    %p83 = scmp.eq.s32.totalorder %s15, 0
    %p84 = por %p82, %p83
    %s85 = ssub.s32 %s9, %s16
    %p86 = scmp.eq.s32.totalorder %s85, 0
    %s88 = sadd.s32 %s87, 1
    %s89 = scalar_select %p86, %s87, %s88
    %p92 = pneg %p86
    %p93 = scmp.eq.s32.totalorder %s9, 1
    %p94 = por %p92, %p93
    %p95 = scmp.ne.s32.totalorder %s87, %s90
    %p96 = scmp.eq.s32.totalorder %s9, 0
    %p97 = por %p95, %p96
    %p98 = scmp.ne.s32.totalorder %s87, %s90
    %p99 = scmp.eq.s32.totalorder %s14, 1
    %p100 = por %p98, %p99
    %p101 = scmp.ne.s32.totalorder %s90, %s91
    %p102 = scmp.eq.s32.totalorder %s14, 0
    %p103 = por %p101, %p102
    %p104 = scmp.ne.s32.totalorder %s90, %s91
    %p105 = scmp.eq.s32.totalorder %s15, 1
    %p106 = por %p104, %p105
    %p108 = scmp.ne.s32.totalorder %s91, %s107
    %p109 = scmp.eq.s32.totalorder %s15, 0
    %p110 = por %p108, %p109
    %p111 = scmp.le.s32.totalorder 1, %s9
    %p112 = scmp.lt.s32.totalorder %s9, 3
    %p113 = pnand %p111, %p112
    %p114 = pneg %p113
    // Predicated region
    $region9: #{lenet5_forward.6} parent=5 // pred_check
      _
    $region10: #{lenet5_forward.6} parent=5 // pred_check_branch
      %116 = sbr.rel (%p113) target = $region12
    $region11: #{lenet5_forward.6} parent=5 // pred_region
      %s117 = ssub.s32 %s9, 1
      // Predicated region
      $region13: #{lenet5_forward.6} parent=11 // pred_check
        %p118 = pneg %p56
      $region14: #{lenet5_forward.6} parent=11 // pred_check_branch
        %120 = sbr.rel (%p118) target = $region16
      $region15: #{lenet5_forward.6} parent=11 // pred_region
        _
      $region16: #{lenet5_forward.6} parent=11 // pred_fallthru
        _
      // Predicated region
      $region17: #{lenet5_forward.6} parent=11 // pred_check
        %p121 = pneg %p77
      $region18: #{lenet5_forward.6} parent=11 // pred_check_branch
        %123 = sbr.rel (%p121) target = $region20
      $region19: #{lenet5_forward.6} parent=11 // pred_region
        _
      $region20: #{lenet5_forward.6} parent=11 // pred_fallthru
        _
    $region12: #{lenet5_forward.6} parent=5 // pred_fallthru
      _
    %p124 = scmp.lt.s32.totalorder %s9, 2
    // Predicated region
    $region21: #{lenet5_forward.6} parent=5 // pred_check
      %p125 = pneg %p124
    $region22: #{lenet5_forward.6} parent=5 // pred_check_branch
      %127 = sbr.rel (%p125) target = $region24
    $region23: #{lenet5_forward.6} parent=5 // pred_region
      // Predicated region
      $region25: #{lenet5_forward.6} parent=23 // pred_check
        %p128 = pneg %p29
      $region26: #{lenet5_forward.6} parent=23 // pred_check_branch
        %130 = sbr.rel (%p128) target = $region28
      $region27: #{lenet5_forward.6} parent=23 // pred_region
        %s131 = smul.u32 32, %s9
        %p132 = scmp.lt.s32.totalorder %s131, 63
        %s133 = scalar_select %p132, %s131, 63
        %s134 = smul.addr %s133, 2
        %s135 = smul.addr %s134, 8
        %s136 = scalar_lea.vmem %s0, %s135
        %s137 = smul.u32 32, %s9
      $region28: #{lenet5_forward.6} parent=23 // pred_fallthru
        _
    $region24: #{lenet5_forward.6} parent=5 // pred_fallthru
      _
    %p138 = scmp.le.s32.totalorder 1, %s9
    %p139 = scmp.lt.s32.totalorder %s9, 3
    %p140 = pnand %p138, %p139
    %p141 = pneg %p140
    // Predicated region
    $region29: #{lenet5_forward.6} parent=5 // pred_check
      _
    $region30: #{lenet5_forward.6} parent=5 // pred_check_branch
      %143 = sbr.rel (%p140) target = $region32
    $region31: #{lenet5_forward.6} parent=5 // pred_region
      %s144 = ssub.s32 %s9, 1
      %s145 = smul.u32 32, %s14
      %p146 = scmp.lt.s32.totalorder %s145, 63
      %s147 = scalar_select %p146, %s145, 63
      %s148 = smul.addr %s147, 2
      %s149 = smul.addr %s148, 8
      %s150 = scalar_lea.vmem %s0, %s149
      %p151 = pneg %p35
      %p152 = pneg %p32
      %p153 = pneg %p56
      %p154 = pneg %p53
      %p155 = pneg %p77
      %p156 = pneg %p74
      %p157 = pneg %p103
      %p158 = pneg %p100
      %s159 = smul.u32 32, %s14
      %p160 = scmp.lt.s32.totalorder %s159, 63
      %s161 = scalar_select %p160, %s159, 63
      %s162 = smul.addr %s161, 8
      %s163 = scalar_lea.vmem %s3, %s162
      %s164 = smul.u32 32, %s14
      %p165 = scmp.lt.s32.totalorder %s164, 63
      %s166 = scalar_select %p165, %s164, 63
      %s167 = smul.addr %s166, 2
      %s168 = smul.addr %s167, 8
      %s169 = scalar_lea.vmem %s0, %s168
      %s170 = smul.u32 32, %s14
      %s171 = smul.u32 32, %s14
      %p172 = scmp.lt.s32.totalorder %s171, 63
      %s173 = scalar_select %p172, %s171, 63
      %s174 = smul.addr %s173, 8
      %s175 = scalar_lea.vmem %s3, %s174
      %s176 = smul.u32 32, %s14
      %v177 = vld [vmem:[%s169] sm:$0xff]
      %v178 = vld [vmem:[%s169 + $0x8] sm:$0xff]
      %v179 = vld [vmem:[%s169 + $0x10] sm:$0xff]
      %v180 = vld [vmem:[%s169 + $0x18] sm:$0xff]
      %v181 = vld [vmem:[%s169 + $0x20] sm:$0xff]
      %v182 = vld [vmem:[%s169 + $0x28] sm:$0xff]
      %v183 = vld [vmem:[%s169 + $0x30] sm:$0xff]
      %v184 = vld [vmem:[%s169 + $0x38] sm:$0xff]
      %v185 = vld [vmem:[%s169 + $0x40] sm:$0xff]
      %v186 = vld [vmem:[%s169 + $0x48] sm:$0xff]
      %v187 = vld [vmem:[%s169 + $0x50] sm:$0xff]
      %v188 = vld [vmem:[%s169 + $0x58] sm:$0xff]
      %v189 = vld [vmem:[%s169 + $0x60] sm:$0xff]
      %v190 = vld [vmem:[%s169 + $0x68] sm:$0xff]
      %v191 = vld [vmem:[%s169 + $0x70] sm:$0xff]
      %v192 = vld [vmem:[%s169 + $0x78] sm:$0xff]
      %v193 = vld [vmem:[%s169 + $0x80] sm:$0xff]
      %v194 = vld [vmem:[%s169 + $0x88] sm:$0xff]
      %v195 = vld [vmem:[%s169 + $0x90] sm:$0xff]
      %v196 = vld [vmem:[%s169 + $0x98] sm:$0xff]
      %v197 = vld [vmem:[%s169 + $0xa0] sm:$0xff]
      %v198 = vld [vmem:[%s169 + $0xa8] sm:$0xff]
      %v199 = vld [vmem:[%s169 + $0xb0] sm:$0xff]
      %v200 = vld [vmem:[%s169 + $0xb8] sm:$0xff]
      %v201 = vld [vmem:[%s169 + $0xc0] sm:$0xff]
      %v202 = vld [vmem:[%s169 + $0xc8] sm:$0xff]
      %v203 = vld [vmem:[%s169 + $0xd0] sm:$0xff]
      %v204 = vld [vmem:[%s169 + $0xd8] sm:$0xff]
      %v205 = vld [vmem:[%s169 + $0xe0] sm:$0xff]
      %v206 = vld [vmem:[%s169 + $0xe8] sm:$0xff]
      %v207 = vld [vmem:[%s169 + $0xf0] sm:$0xff]
      %v208 = vld [vmem:[%s169 + $0xf8] sm:$0xff]
      %v209 = vld [vmem:[%s169 + $0x100] sm:$0xff]
      %v210 = vld [vmem:[%s169 + $0x108] sm:$0xff]
      %v211 = vld [vmem:[%s169 + $0x110] sm:$0xff]
      %v212 = vld [vmem:[%s169 + $0x118] sm:$0xff]
      %v213 = vld [vmem:[%s169 + $0x120] sm:$0xff]
      %v214 = vld [vmem:[%s169 + $0x128] sm:$0xff]
      %v215 = vld [vmem:[%s169 + $0x130] sm:$0xff]
      %v216 = vld [vmem:[%s169 + $0x138] sm:$0xff]
      %v217 = vld [vmem:[%s169 + $0x140] sm:$0xff]
      %v218 = vld [vmem:[%s169 + $0x148] sm:$0xff]
      %v219 = vld [vmem:[%s169 + $0x150] sm:$0xff]
      %v220 = vld [vmem:[%s169 + $0x158] sm:$0xff]
      %v221 = vld [vmem:[%s169 + $0x160] sm:$0xff]
      %v222 = vld [vmem:[%s169 + $0x168] sm:$0xff]
      %v223 = vld [vmem:[%s169 + $0x170] sm:$0xff]
      %v224 = vld [vmem:[%s169 + $0x178] sm:$0xff]
      %v225 = vld [vmem:[%s169 + $0x180] sm:$0xff]
      %v226 = vld [vmem:[%s169 + $0x188] sm:$0xff]
      %v227 = vld [vmem:[%s169 + $0x190] sm:$0xff]
      %v228 = vld [vmem:[%s169 + $0x198] sm:$0xff]
      %v229 = vld [vmem:[%s169 + $0x1a0] sm:$0xff]
      %v230 = vld [vmem:[%s169 + $0x1a8] sm:$0xff]
      %v231 = vld [vmem:[%s169 + $0x1b0] sm:$0xff]
      %v232 = vld [vmem:[%s169 + $0x1b8] sm:$0xff]
      %v233 = vld [vmem:[%s169 + $0x1c0] sm:$0xff]
      %v234 = vld [vmem:[%s169 + $0x1c8] sm:$0xff]
      %v235 = vld [vmem:[%s169 + $0x1d0] sm:$0xff]
      %v236 = vld [vmem:[%s169 + $0x1d8] sm:$0xff]
      %v237 = vld [vmem:[%s169 + $0x1e0] sm:$0xff]
      %v238 = vld [vmem:[%s169 + $0x1e8] sm:$0xff]
      %v239 = vld [vmem:[%s169 + $0x1f0] sm:$0xff]
      %v240 = vld [vmem:[%s169 + $0x1f8] sm:$0xff]
      %v241 = vld [vmem:[%s1] sm:$0xff]
      %v242 = vld [vmem:[%s1 + $0x8] sm:$0xff]
      %v243 = vld [vmem:[%s1 + $0x10] sm:$0xff]
      %v244 = vld [vmem:[%s1 + $0x18] sm:$0xff]
      %v245 = vld [vmem:[%s1 + $0x20] sm:$0xff]
      %v246 = vld [vmem:[%s1 + $0x28] sm:$0xff]
      %v247 = vld [vmem:[%s1 + $0x30] sm:$0xff]
      %v248 = vld [vmem:[%s1 + $0x38] sm:$0xff]
      %v249 = vld [vmem:[%s1 + $0x40] sm:$0xff]
      %v250 = vld [vmem:[%s1 + $0x48] sm:$0xff]
      %v251 = vld [vmem:[%s1 + $0x50] sm:$0xff]
      %v252 = vld [vmem:[%s1 + $0x58] sm:$0xff]
      %v253 = vld [vmem:[%s1 + $0x60] sm:$0xff]
      %v254 = vld [vmem:[%s1 + $0x68] sm:$0xff]
      %v255 = vld [vmem:[%s1 + $0x70] sm:$0xff]
      %v256 = vld [vmem:[%s1 + $0x78] sm:$0xff]
      %v257 = vld [vmem:[%s1 + $0x80] sm:$0xff]
      %v258 = vld [vmem:[%s1 + $0x88] sm:$0xff]
      %v259 = vld [vmem:[%s1 + $0x90] sm:$0xff]
      %v260 = vld [vmem:[%s1 + $0x98] sm:$0xff]
      %v261 = vld [vmem:[%s1 + $0xa0] sm:$0xff]
      %v262 = vld [vmem:[%s1 + $0xa8] sm:$0xff]
      %v263 = vld [vmem:[%s1 + $0xb0] sm:$0xff]
      %v264 = vld [vmem:[%s1 + $0xb8] sm:$0xff]
      %v265 = vld [vmem:[%s1 + $0xc0] sm:$0xff]
      %v266 = vld [vmem:[%s1 + $0xc8] sm:$0xff]
      %v267 = vld [vmem:[%s1 + $0xd0] sm:$0xff]
      %v268 = vld [vmem:[%s1 + $0xd8] sm:$0xff]
      %v269 = vld [vmem:[%s1 + $0xe0] sm:$0xff]
      %v270 = vld [vmem:[%s1 + $0xe8] sm:$0xff]
      %v271 = vld [vmem:[%s1 + $0xf0] sm:$0xff]
      %v272 = vld [vmem:[%s1 + $0xf8] sm:$0xff]
      %v273 = vld [vmem:[%s2] sm:$0x1]
      %v275 = vlaneseq
      %v276 = vshrl.u32 %v275, 7
      %v277 = vsub.s32 0, %v276
      %v278 = vrot.slane %v273, %v277
      %280 = vmatprep.subr.mxu0 0.0
      %281 = vmatpush1.msra.mxu0 %v256
      %282 = vmatprep.subr.mxu0 0.0
      %283 = vmatpush1.msra.mxu0 %v255
      %284 = vmatprep.subr.mxu0 0.0
      %285 = vmatpush1.msra.mxu0 %v254
      %286 = vmatprep.subr.mxu0 0.0
      %287 = vmatpush1.msra.mxu0 %v253
      %288 = vmatprep.subr.mxu0 0.0
      %289 = vmatpush1.msra.mxu0 %v252
      %290 = vmatprep.subr.mxu0 0.0
      %291 = vmatpush1.msra.mxu0 %v251
      %292 = vmatprep.subr.mxu0 0.0
      %293 = vmatpush1.msra.mxu0 %v250
      %294 = vmatprep.subr.mxu0 0.0
      %295 = vmatpush1.msra.mxu0 %v249
      %296 = vmatprep.subr.mxu0 0.0
      %297 = vmatpush1.msra.mxu0 %v248
      %298 = vmatprep.subr.mxu0 0.0
      %299 = vmatpush1.msra.mxu0 %v247
      %300 = vmatprep.subr.mxu0 0.0
      %301 = vmatpush1.msra.mxu0 %v246
      %302 = vmatprep.subr.mxu0 0.0
      %303 = vmatpush1.msra.mxu0 %v245
      %304 = vmatprep.subr.mxu0 0.0
      %305 = vmatpush1.msra.mxu0 %v244
      %306 = vmatprep.subr.mxu0 0.0
      %307 = vmatpush1.msra.mxu0 %v243
      %308 = vmatprep.subr.mxu0 0.0
      %309 = vmatpush1.msra.mxu0 %v242
      %310 = vmatprep.subr.mxu0 0.0
      %311 = vmatpush1.msra.mxu0 %v241
      %312 = vmatprep.subr.mxu0 0.0
      %313 = vmatpush2.msra.mxu0 %v272
      %314 = vmatprep.subr.mxu0 0.0
      %315 = vmatpush2.msra.mxu0 %v271
      %316 = vmatprep.subr.mxu0 0.0
      %317 = vmatpush2.msra.mxu0 %v270
      %318 = vmatprep.subr.mxu0 0.0
      %319 = vmatpush2.msra.mxu0 %v269
      %320 = vmatprep.subr.mxu0 0.0
      %321 = vmatpush2.msra.mxu0 %v268
      %322 = vmatprep.subr.mxu0 0.0
      %323 = vmatpush2.msra.mxu0 %v267
      %324 = vmatprep.subr.mxu0 0.0
      %325 = vmatpush2.msra.mxu0 %v266
      %326 = vmatprep.subr.mxu0 0.0
      %327 = vmatpush2.msra.mxu0 %v265
      %328 = vmatprep.subr.mxu0 0.0
      %329 = vmatpush2.msra.mxu0 %v264
      %330 = vmatprep.subr.mxu0 0.0
      %331 = vmatpush2.msra.mxu0 %v263
      %332 = vmatprep.subr.mxu0 0.0
      %333 = vmatpush2.msra.mxu0 %v262
      %334 = vmatprep.subr.mxu0 0.0
      %335 = vmatpush2.msra.mxu0 %v261
      %336 = vmatprep.subr.mxu0 0.0
      %337 = vmatpush2.msra.mxu0 %v260
      %338 = vmatprep.subr.mxu0 0.0
      %339 = vmatpush2.msra.mxu0 %v259
      %340 = vmatprep.subr.mxu0 0.0
      %341 = vmatpush2.msra.mxu0 %v258
      %342 = vmatprep.subr.mxu0 0.0
      %343 = vmatpush2.msra.mxu0 %v257
      %344 = vmatprep.mubr.f32.mxu0 %v178
      %345 = vmatmul.mubr.f32.gmra.mxu0 %v177
      %v346 = vpop.f32.mrf.mxu0
      %v347 = vadd.f32 %v278, %v346
      %v348 = vpop.f32.mrf.mxu0
      %349 = vmatprep.mubr.f32.mxu0 %v180
      %350 = vmatmul.mubr.f32.gmra.mxu0 %v179
      %v351 = vpop.f32.mrf.mxu0
      %v352 = vadd.f32 %v278, %v351
      %v353 = vpop.f32.mrf.mxu0
      %354 = vmatprep.mubr.f32.mxu0 %v182
      %355 = vmatmul.mubr.f32.gmra.mxu0 %v181
      %v356 = vpop.f32.mrf.mxu0
      %v357 = vadd.f32 %v278, %v356
      %v358 = vpop.f32.mrf.mxu0
      %359 = vmatprep.mubr.f32.mxu0 %v184
      %360 = vmatmul.mubr.f32.gmra.mxu0 %v183
      %v361 = vpop.f32.mrf.mxu0
      %v362 = vadd.f32 %v278, %v361
      %v363 = vpop.f32.mrf.mxu0
      %364 = vmatprep.mubr.f32.mxu0 %v186
      %365 = vmatmul.mubr.f32.gmra.mxu0 %v185
      %v366 = vpop.f32.mrf.mxu0
      %v367 = vadd.f32 %v278, %v366
      %v368 = vpop.f32.mrf.mxu0
      %369 = vmatprep.mubr.f32.mxu0 %v188
      %370 = vmatmul.mubr.f32.gmra.mxu0 %v187
      %v371 = vpop.f32.mrf.mxu0
      %v372 = vadd.f32 %v278, %v371
      %v373 = vpop.f32.mrf.mxu0
      %374 = vmatprep.mubr.f32.mxu0 %v190
      %375 = vmatmul.mubr.f32.gmra.mxu0 %v189
      %v376 = vpop.f32.mrf.mxu0
      %v377 = vadd.f32 %v278, %v376
      %v378 = vpop.f32.mrf.mxu0
      %379 = vmatprep.mubr.f32.mxu0 %v192
      %380 = vmatmul.mubr.f32.gmra.mxu0 %v191
      %v381 = vpop.f32.mrf.mxu0
      %v382 = vadd.f32 %v278, %v381
      %v383 = vpop.f32.mrf.mxu0
      %384 = vmatprep.mubr.f32.mxu0 %v194
      %385 = vmatmul.mubr.f32.gmra.mxu0 %v193
      %v386 = vpop.f32.mrf.mxu0
      %v387 = vadd.f32 %v278, %v386
      %v388 = vpop.f32.mrf.mxu0
      %389 = vmatprep.mubr.f32.mxu0 %v196
      %390 = vmatmul.mubr.f32.gmra.mxu0 %v195
      %v391 = vpop.f32.mrf.mxu0
      %v392 = vadd.f32 %v278, %v391
      %v393 = vpop.f32.mrf.mxu0
      %394 = vmatprep.mubr.f32.mxu0 %v198
      %395 = vmatmul.mubr.f32.gmra.mxu0 %v197
      %v396 = vpop.f32.mrf.mxu0
      %v397 = vadd.f32 %v278, %v396
      %v398 = vpop.f32.mrf.mxu0
      %399 = vmatprep.mubr.f32.mxu0 %v200
      %400 = vmatmul.mubr.f32.gmra.mxu0 %v199
      %v401 = vpop.f32.mrf.mxu0
      %v402 = vadd.f32 %v278, %v401
      %v403 = vpop.f32.mrf.mxu0
      %404 = vmatprep.mubr.f32.mxu0 %v202
      %405 = vmatmul.mubr.f32.gmra.mxu0 %v201
      %v406 = vpop.f32.mrf.mxu0
      %v407 = vadd.f32 %v278, %v406
      %v408 = vpop.f32.mrf.mxu0
      %409 = vmatprep.mubr.f32.mxu0 %v204
      %410 = vmatmul.mubr.f32.gmra.mxu0 %v203
      %v411 = vpop.f32.mrf.mxu0
      %v412 = vadd.f32 %v278, %v411
      %v413 = vpop.f32.mrf.mxu0
      %414 = vmatprep.mubr.f32.mxu0 %v206
      %415 = vmatmul.mubr.f32.gmra.mxu0 %v205
      %v416 = vpop.f32.mrf.mxu0
      %v417 = vadd.f32 %v278, %v416
      %v418 = vpop.f32.mrf.mxu0
      %419 = vmatprep.mubr.f32.mxu0 %v208
      %420 = vmatmul.mubr.f32.gmra.mxu0 %v207
      %v421 = vpop.f32.mrf.mxu0
      %v422 = vadd.f32 %v278, %v421
      %v423 = vpop.f32.mrf.mxu0
      %424 = vmatprep.mubr.f32.mxu0 %v210
      %425 = vmatmul.mubr.f32.gmra.mxu0 %v209
      %v426 = vpop.f32.mrf.mxu0
      %v427 = vadd.f32 %v278, %v426
      %v428 = vpop.f32.mrf.mxu0
      %429 = vmatprep.mubr.f32.mxu0 %v212
      %430 = vmatmul.mubr.f32.gmra.mxu0 %v211
      %v431 = vpop.f32.mrf.mxu0
      %v432 = vadd.f32 %v278, %v431
      %v433 = vpop.f32.mrf.mxu0
      %434 = vmatprep.mubr.f32.mxu0 %v214
      %435 = vmatmul.mubr.f32.gmra.mxu0 %v213
      %v436 = vpop.f32.mrf.mxu0
      %v437 = vadd.f32 %v278, %v436
      %v438 = vpop.f32.mrf.mxu0
      %439 = vmatprep.mubr.f32.mxu0 %v216
      %440 = vmatmul.mubr.f32.gmra.mxu0 %v215
      %v441 = vpop.f32.mrf.mxu0
      %v442 = vadd.f32 %v278, %v441
      %v443 = vpop.f32.mrf.mxu0
      %444 = vmatprep.mubr.f32.mxu0 %v218
      %445 = vmatmul.mubr.f32.gmra.mxu0 %v217
      %v446 = vpop.f32.mrf.mxu0
      %v447 = vadd.f32 %v278, %v446
      %v448 = vpop.f32.mrf.mxu0
      %449 = vmatprep.mubr.f32.mxu0 %v220
      %450 = vmatmul.mubr.f32.gmra.mxu0 %v219
      %v451 = vpop.f32.mrf.mxu0
      %v452 = vadd.f32 %v278, %v451
      %v453 = vpop.f32.mrf.mxu0
      %454 = vmatprep.mubr.f32.mxu0 %v222
      %455 = vmatmul.mubr.f32.gmra.mxu0 %v221
      %v456 = vpop.f32.mrf.mxu0
      %v457 = vadd.f32 %v278, %v456
      %v458 = vpop.f32.mrf.mxu0
      %459 = vmatprep.mubr.f32.mxu0 %v224
      %460 = vmatmul.mubr.f32.gmra.mxu0 %v223
      %v461 = vpop.f32.mrf.mxu0
      %v462 = vadd.f32 %v278, %v461
      %v463 = vpop.f32.mrf.mxu0
      %464 = vmatprep.mubr.f32.mxu0 %v226
      %465 = vmatmul.mubr.f32.gmra.mxu0 %v225
      %v466 = vpop.f32.mrf.mxu0
      %v467 = vadd.f32 %v278, %v466
      %v468 = vpop.f32.mrf.mxu0
      %469 = vmatprep.mubr.f32.mxu0 %v228
      %470 = vmatmul.mubr.f32.gmra.mxu0 %v227
      %v471 = vpop.f32.mrf.mxu0
      %v472 = vadd.f32 %v278, %v471
      %v473 = vpop.f32.mrf.mxu0
      %474 = vmatprep.mubr.f32.mxu0 %v230
      %475 = vmatmul.mubr.f32.gmra.mxu0 %v229
      %v476 = vpop.f32.mrf.mxu0
      %v477 = vadd.f32 %v278, %v476
      %v478 = vpop.f32.mrf.mxu0
      %479 = vmatprep.mubr.f32.mxu0 %v232
      %480 = vmatmul.mubr.f32.gmra.mxu0 %v231
      %v481 = vpop.f32.mrf.mxu0
      %v482 = vadd.f32 %v278, %v481
      %v483 = vpop.f32.mrf.mxu0
      %484 = vmatprep.mubr.f32.mxu0 %v234
      %485 = vmatmul.mubr.f32.gmra.mxu0 %v233
      %v486 = vpop.f32.mrf.mxu0
      %v487 = vadd.f32 %v278, %v486
      %v488 = vpop.f32.mrf.mxu0
      %489 = vmatprep.mubr.f32.mxu0 %v236
      %490 = vmatmul.mubr.f32.gmra.mxu0 %v235
      %v491 = vpop.f32.mrf.mxu0
      %v492 = vadd.f32 %v278, %v491
      %v493 = vpop.f32.mrf.mxu0
      %494 = vmatprep.mubr.f32.mxu0 %v238
      %495 = vmatmul.mubr.f32.gmra.mxu0 %v237
      %v496 = vpop.f32.mrf.mxu0
      %v497 = vadd.f32 %v278, %v496
      %v498 = vpop.f32.mrf.mxu0
      %499 = vmatprep.mubr.f32.mxu0 %v240
      %500 = vmatmul.mubr.f32.gmra.mxu0 %v239
      %v501 = vpop.f32.mrf.mxu0
      %v502 = vadd.f32 %v278, %v501
      %v503 = vpop.f32.mrf.mxu0
      %504 = vdwg.mxu0
      %v505 = vmax.f32 %v347, 0.0
      %v506 = vmax.f32 %v352, 0.0
      %v507 = vmax.f32 %v357, 0.0
      %v508 = vmax.f32 %v362, 0.0
      %v509 = vmax.f32 %v367, 0.0
      %v510 = vmax.f32 %v372, 0.0
      %v511 = vmax.f32 %v377, 0.0
      %v512 = vmax.f32 %v382, 0.0
      %v513 = vmax.f32 %v387, 0.0
      %v514 = vmax.f32 %v392, 0.0
      %v515 = vmax.f32 %v397, 0.0
      %v516 = vmax.f32 %v402, 0.0
      %v517 = vmax.f32 %v407, 0.0
      %v518 = vmax.f32 %v412, 0.0
      %v519 = vmax.f32 %v417, 0.0
      %v520 = vmax.f32 %v422, 0.0
      %v521 = vmax.f32 %v427, 0.0
      %v522 = vmax.f32 %v432, 0.0
      %v523 = vmax.f32 %v437, 0.0
      %v524 = vmax.f32 %v442, 0.0
      %v525 = vmax.f32 %v447, 0.0
      %v526 = vmax.f32 %v452, 0.0
      %v527 = vmax.f32 %v457, 0.0
      %v528 = vmax.f32 %v462, 0.0
      %v529 = vmax.f32 %v467, 0.0
      %v530 = vmax.f32 %v472, 0.0
      %v531 = vmax.f32 %v477, 0.0
      %v532 = vmax.f32 %v482, 0.0
      %v533 = vmax.f32 %v487, 0.0
      %v534 = vmax.f32 %v492, 0.0
      %v535 = vmax.f32 %v497, 0.0
      %v536 = vmax.f32 %v502, 0.0
      %537 = vst [vmem:[%s175] sm:$0xff] %v505
      %538 = vst [vmem:[%s175 + $0x8] sm:$0xff] %v506
      %539 = vst [vmem:[%s175 + $0x10] sm:$0xff] %v507
      %540 = vst [vmem:[%s175 + $0x18] sm:$0xff] %v508
      %541 = vst [vmem:[%s175 + $0x20] sm:$0xff] %v509
      %542 = vst [vmem:[%s175 + $0x28] sm:$0xff] %v510
      %543 = vst [vmem:[%s175 + $0x30] sm:$0xff] %v511
      %544 = vst [vmem:[%s175 + $0x38] sm:$0xff] %v512
      %545 = vst [vmem:[%s175 + $0x40] sm:$0xff] %v513
      %546 = vst [vmem:[%s175 + $0x48] sm:$0xff] %v514
      %547 = vst [vmem:[%s175 + $0x50] sm:$0xff] %v515
      %548 = vst [vmem:[%s175 + $0x58] sm:$0xff] %v516
      %549 = vst [vmem:[%s175 + $0x60] sm:$0xff] %v517
      %550 = vst [vmem:[%s175 + $0x68] sm:$0xff] %v518
      %551 = vst [vmem:[%s175 + $0x70] sm:$0xff] %v519
      %552 = vst [vmem:[%s175 + $0x78] sm:$0xff] %v520
      %553 = vst [vmem:[%s175 + $0x80] sm:$0xff] %v521
      %554 = vst [vmem:[%s175 + $0x88] sm:$0xff] %v522
      %555 = vst [vmem:[%s175 + $0x90] sm:$0xff] %v523
      %556 = vst [vmem:[%s175 + $0x98] sm:$0xff] %v524
      %557 = vst [vmem:[%s175 + $0xa0] sm:$0xff] %v525
      %558 = vst [vmem:[%s175 + $0xa8] sm:$0xff] %v526
      %559 = vst [vmem:[%s175 + $0xb0] sm:$0xff] %v527
      %560 = vst [vmem:[%s175 + $0xb8] sm:$0xff] %v528
      %561 = vst [vmem:[%s175 + $0xc0] sm:$0xff] %v529
      %562 = vst [vmem:[%s175 + $0xc8] sm:$0xff] %v530
      %563 = vst [vmem:[%s175 + $0xd0] sm:$0xff] %v531
      %564 = vst [vmem:[%s175 + $0xd8] sm:$0xff] %v532
      %565 = vst [vmem:[%s175 + $0xe0] sm:$0xff] %v533
      %566 = vst [vmem:[%s175 + $0xe8] sm:$0xff] %v534
      %567 = vst [vmem:[%s175 + $0xf0] sm:$0xff] %v535
      %568 = vst [vmem:[%s175 + $0xf8] sm:$0xff] %v536
      %s569 = smul.u32 32, %s14
      %p570 = scmp.lt.s32.totalorder %s569, 63
      %s571 = scalar_select %p570, %s569, 63
      %s572 = smul.addr %s571, 8
      %s573 = scalar_lea.vmem %s3, %s572
      // Predicated region
      $region33: #{lenet5_forward.6} parent=31 // pred_check
        %p574 = pneg %p100
      $region34: #{lenet5_forward.6} parent=31 // pred_check_branch
        %576 = sbr.rel (%p574) target = $region36
      $region35: #{lenet5_forward.6} parent=31 // pred_region
        %s577 = smul.u32 32, %s14
      $region36: #{lenet5_forward.6} parent=31 // pred_fallthru
        _
    $region32: #{lenet5_forward.6} parent=5 // pred_fallthru
      _
    %p578 = scmp.le.s32.totalorder 2, %s9
    // Predicated region
    $region37: #{lenet5_forward.6} parent=5 // pred_check
      %p579 = pneg %p578
    $region38: #{lenet5_forward.6} parent=5 // pred_check_branch
      %581 = sbr.rel (%p579) target = $region40
    $region39: #{lenet5_forward.6} parent=5 // pred_region
      %s582 = ssub.s32 %s9, 2
      // Predicated region
      $region41: #{lenet5_forward.6} parent=39 // pred_check
        %p583 = pneg %p106
      $region42: #{lenet5_forward.6} parent=39 // pred_check_branch
        %585 = sbr.rel (%p583) target = $region44
      $region43: #{lenet5_forward.6} parent=39 // pred_region
        %s586 = smul.u32 32, %s15
        %p587 = scmp.lt.s32.totalorder %s586, 63
        %s588 = scalar_select %p587, %s586, 63
        %s589 = smul.addr %s588, 8
        %s590 = scalar_lea.vmem %s3, %s589
      $region44: #{lenet5_forward.6} parent=39 // pred_fallthru
        _
    $region40: #{lenet5_forward.6} parent=5 // pred_fallthru
      _
  $region6: #{lenet5_forward.6} parent=0 // loop_footer
    %s13 = sadd.s32 1, %s9
  $region7: #{lenet5_forward.6} parent=0 // loop_footer_branch
    %8 = sbr.rel target = $region3
  $region8: #{lenet5_forward.6} parent=0 // loop_exit
    _

// kernel: lenet5_forward.8
$region0: #{lenet5_forward.8}
  #allocation0 [shape = 'u32[]', space=smem, size = 0x4, offset = 0x4, fixed_abs, tag = 'smem constant byte address 0x4 - core index']
  #allocation1 [shape = 'u32[144,128]{1,0:T(1,128)}', space=vmem, size = 0x12000, scoped, tag = 'internal scratch']
  %s0 = inlined_call_operand.vmem [shape: f32[8,512], index: 0, kind: input, shape index: {}]
  %s1 = inlined_call_operand.vmem [shape: f32[512,128], index: 1, kind: input, shape index: {}]
  %s2 = inlined_call_operand.vmem [shape: f32[1,128], index: 2, kind: input, shape index: {}]
  %s3 = inlined_call_operand.vmem [shape: f32[8,128], index: 3, kind: output, shape index: {}]
  %s4 = sld [smem:[#allocation0]]
  $region22: #{lenet5_forward.8} parent=0
    _
  %s6 = ssub.s32 1, %s4
  %s7 = scalar_select 0, %s6, %s4
  // Predicated region
  $region2: #{lenet5_forward.8} parent=0 // pred_check
    _
  $region3: #{lenet5_forward.8} parent=0 // pred_check_branch
    %9 = sbr.rel (0) target = $region5
  $region4: #{lenet5_forward.8} parent=0 // pred_region
    _
  $region5: #{lenet5_forward.8} parent=0 // pred_fallthru
    _
  // Predicated region
  $region6: #{lenet5_forward.8} parent=0 // pred_check
    _
  $region7: #{lenet5_forward.8} parent=0 // pred_check_branch
    %11 = sbr.rel (0) target = $region9
  $region8: #{lenet5_forward.8} parent=0 // pred_region
    _
  $region9: #{lenet5_forward.8} parent=0 // pred_fallthru
    _
  // Predicated region
  $region10: #{lenet5_forward.8} parent=0 // pred_check
    _
  $region11: #{lenet5_forward.8} parent=0 // pred_check_branch
    %13 = sbr.rel (0) target = $region13
  $region12: #{lenet5_forward.8} parent=0 // pred_region
    _
  $region13: #{lenet5_forward.8} parent=0 // pred_fallthru
    _
  %v14 = vld [vmem:[%s0] sm:$0xff]
  %v15 = vld [vmem:[%s0 + $0x8] sm:$0xff]
  %v16 = vld [vmem:[%s0 + $0x10] sm:$0xff]
  %v17 = vld [vmem:[%s0 + $0x18] sm:$0xff]
  %v18 = vld [vmem:[%s1] sm:$0xff]
  %v19 = vld [vmem:[%s1 + $0x8] sm:$0xff]
  %v20 = vld [vmem:[%s1 + $0x10] sm:$0xff]
  %v21 = vld [vmem:[%s1 + $0x18] sm:$0xff]
  %v22 = vld [vmem:[%s1 + $0x20] sm:$0xff]
  %v23 = vld [vmem:[%s1 + $0x28] sm:$0xff]
  %v24 = vld [vmem:[%s1 + $0x30] sm:$0xff]
  %v25 = vld [vmem:[%s1 + $0x38] sm:$0xff]
  %v26 = vld [vmem:[%s1 + $0x40] sm:$0xff]
  %v27 = vld [vmem:[%s1 + $0x48] sm:$0xff]
  %v28 = vld [vmem:[%s1 + $0x50] sm:$0xff]
  %v29 = vld [vmem:[%s1 + $0x58] sm:$0xff]
  %v30 = vld [vmem:[%s1 + $0x60] sm:$0xff]
  %v31 = vld [vmem:[%s1 + $0x68] sm:$0xff]
  %v32 = vld [vmem:[%s1 + $0x70] sm:$0xff]
  %v33 = vld [vmem:[%s1 + $0x78] sm:$0xff]
  %v34 = vld [vmem:[%s1 + $0x80] sm:$0xff]
  %v35 = vld [vmem:[%s1 + $0x88] sm:$0xff]
  %v36 = vld [vmem:[%s1 + $0x90] sm:$0xff]
  %v37 = vld [vmem:[%s1 + $0x98] sm:$0xff]
  %v38 = vld [vmem:[%s1 + $0xa0] sm:$0xff]
  %v39 = vld [vmem:[%s1 + $0xa8] sm:$0xff]
  %v40 = vld [vmem:[%s1 + $0xb0] sm:$0xff]
  %v41 = vld [vmem:[%s1 + $0xb8] sm:$0xff]
  %v42 = vld [vmem:[%s1 + $0xc0] sm:$0xff]
  %v43 = vld [vmem:[%s1 + $0xc8] sm:$0xff]
  %v44 = vld [vmem:[%s1 + $0xd0] sm:$0xff]
  %v45 = vld [vmem:[%s1 + $0xd8] sm:$0xff]
  %v46 = vld [vmem:[%s1 + $0xe0] sm:$0xff]
  %v47 = vld [vmem:[%s1 + $0xe8] sm:$0xff]
  %v48 = vld [vmem:[%s1 + $0xf0] sm:$0xff]
  %v49 = vld [vmem:[%s1 + $0xf8] sm:$0xff]
  %v50 = vld [vmem:[%s1 + $0x100] sm:$0xff]
  %v51 = vld [vmem:[%s1 + $0x108] sm:$0xff]
  %v52 = vld [vmem:[%s1 + $0x110] sm:$0xff]
  %v53 = vld [vmem:[%s1 + $0x118] sm:$0xff]
  %v54 = vld [vmem:[%s1 + $0x120] sm:$0xff]
  %v55 = vld [vmem:[%s1 + $0x128] sm:$0xff]
  %v56 = vld [vmem:[%s1 + $0x130] sm:$0xff]
  %v57 = vld [vmem:[%s1 + $0x138] sm:$0xff]
  %v58 = vld [vmem:[%s1 + $0x140] sm:$0xff]
  %v59 = vld [vmem:[%s1 + $0x148] sm:$0xff]
  %v60 = vld [vmem:[%s1 + $0x150] sm:$0xff]
  %v61 = vld [vmem:[%s1 + $0x158] sm:$0xff]
  %v62 = vld [vmem:[%s1 + $0x160] sm:$0xff]
  %v63 = vld [vmem:[%s1 + $0x168] sm:$0xff]
  %v64 = vld [vmem:[%s1 + $0x170] sm:$0xff]
  %v65 = vld [vmem:[%s1 + $0x178] sm:$0xff]
  %v66 = vld [vmem:[%s1 + $0x180] sm:$0xff]
  %v67 = vld [vmem:[%s1 + $0x188] sm:$0xff]
  %v68 = vld [vmem:[%s1 + $0x190] sm:$0xff]
  %v69 = vld [vmem:[%s1 + $0x198] sm:$0xff]
  %v70 = vld [vmem:[%s1 + $0x1a0] sm:$0xff]
  %v71 = vld [vmem:[%s1 + $0x1a8] sm:$0xff]
  %v72 = vld [vmem:[%s1 + $0x1b0] sm:$0xff]
  %v73 = vld [vmem:[%s1 + $0x1b8] sm:$0xff]
  %v74 = vld [vmem:[%s1 + $0x1c0] sm:$0xff]
  %v75 = vld [vmem:[%s1 + $0x1c8] sm:$0xff]
  %v76 = vld [vmem:[%s1 + $0x1d0] sm:$0xff]
  %v77 = vld [vmem:[%s1 + $0x1d8] sm:$0xff]
  %v78 = vld [vmem:[%s1 + $0x1e0] sm:$0xff]
  %v79 = vld [vmem:[%s1 + $0x1e8] sm:$0xff]
  %v80 = vld [vmem:[%s1 + $0x1f0] sm:$0xff]
  %v81 = vld [vmem:[%s1 + $0x1f8] sm:$0xff]
  %v82 = vld [vmem:[%s2] sm:$0x1]
  %v84 = vlaneseq
  %v85 = vshrl.u32 %v84, 7
  %v86 = vsub.s32 0, %v85
  %v87 = vrot.slane %v82, %v86
  %89 = vmatprep.subr.mxu0 0.0
  %90 = vmatpush1.msra.mxu0 %v33
  %91 = vmatprep.subr.mxu0 0.0
  %92 = vmatpush1.msra.mxu0 %v32
  %93 = vmatprep.subr.mxu0 0.0
  %94 = vmatpush1.msra.mxu0 %v31
  %95 = vmatprep.subr.mxu0 0.0
  %96 = vmatpush1.msra.mxu0 %v30
  %97 = vmatprep.subr.mxu0 0.0
  %98 = vmatpush1.msra.mxu0 %v29
  %99 = vmatprep.subr.mxu0 0.0
  %100 = vmatpush1.msra.mxu0 %v28
  %101 = vmatprep.subr.mxu0 0.0
  %102 = vmatpush1.msra.mxu0 %v27
  %103 = vmatprep.subr.mxu0 0.0
  %104 = vmatpush1.msra.mxu0 %v26
  %105 = vmatprep.subr.mxu0 0.0
  %106 = vmatpush1.msra.mxu0 %v25
  %107 = vmatprep.subr.mxu0 0.0
  %108 = vmatpush1.msra.mxu0 %v24
  %109 = vmatprep.subr.mxu0 0.0
  %110 = vmatpush1.msra.mxu0 %v23
  %111 = vmatprep.subr.mxu0 0.0
  %112 = vmatpush1.msra.mxu0 %v22
  %113 = vmatprep.subr.mxu0 0.0
  %114 = vmatpush1.msra.mxu0 %v21
  %115 = vmatprep.subr.mxu0 0.0
  %116 = vmatpush1.msra.mxu0 %v20
  %117 = vmatprep.subr.mxu0 0.0
  %118 = vmatpush1.msra.mxu0 %v19
  %119 = vmatprep.subr.mxu0 0.0
  %120 = vmatpush1.msra.mxu0 %v18
  %121 = vmatprep.subr.mxu0 0.0
  %122 = vmatpush2.msra.mxu0 %v49
  %123 = vmatprep.subr.mxu0 0.0
  %124 = vmatpush2.msra.mxu0 %v48
  %125 = vmatprep.subr.mxu0 0.0
  %126 = vmatpush2.msra.mxu0 %v47
  %127 = vmatprep.subr.mxu0 0.0
  %128 = vmatpush2.msra.mxu0 %v46
  %129 = vmatprep.subr.mxu0 0.0
  %130 = vmatpush2.msra.mxu0 %v45
  %131 = vmatprep.subr.mxu0 0.0
  %132 = vmatpush2.msra.mxu0 %v44
  %133 = vmatprep.subr.mxu0 0.0
  %134 = vmatpush2.msra.mxu0 %v43
  %135 = vmatprep.subr.mxu0 0.0
  %136 = vmatpush2.msra.mxu0 %v42
  %137 = vmatprep.subr.mxu0 0.0
  %138 = vmatpush2.msra.mxu0 %v41
  %139 = vmatprep.subr.mxu0 0.0
  %140 = vmatpush2.msra.mxu0 %v40
  %141 = vmatprep.subr.mxu0 0.0
  %142 = vmatpush2.msra.mxu0 %v39
  %143 = vmatprep.subr.mxu0 0.0
  %144 = vmatpush2.msra.mxu0 %v38
  %145 = vmatprep.subr.mxu0 0.0
  %146 = vmatpush2.msra.mxu0 %v37
  %147 = vmatprep.subr.mxu0 0.0
  %148 = vmatpush2.msra.mxu0 %v36
  %149 = vmatprep.subr.mxu0 0.0
  %150 = vmatpush2.msra.mxu0 %v35
  %151 = vmatprep.subr.mxu0 0.0
  %152 = vmatpush2.msra.mxu0 %v34
  %153 = vmatprep.mubr.f32.mxu0 %v15
  %154 = vmatmul.mubr.f32.gmra.mxu0 %v14
  %v155 = vpop.f32.mrf.mxu0
  %v156 = vadd.f32 %v87, %v155
  %v157 = vpop.f32.mrf.mxu0
  %158 = vdwg.mxu0
  %159 = vmatprep.subr.mxu0 0.0
  %160 = vmatpush1.msra.mxu0 %v65
  %161 = vmatprep.subr.mxu0 0.0
  %162 = vmatpush1.msra.mxu0 %v64
  %163 = vmatprep.subr.mxu0 0.0
  %164 = vmatpush1.msra.mxu0 %v63
  %165 = vmatprep.subr.mxu0 0.0
  %166 = vmatpush1.msra.mxu0 %v62
  %167 = vmatprep.subr.mxu0 0.0
  %168 = vmatpush1.msra.mxu0 %v61
  %169 = vmatprep.subr.mxu0 0.0
  %170 = vmatpush1.msra.mxu0 %v60
  %171 = vmatprep.subr.mxu0 0.0
  %172 = vmatpush1.msra.mxu0 %v59
  %173 = vmatprep.subr.mxu0 0.0
  %174 = vmatpush1.msra.mxu0 %v58
  %175 = vmatprep.subr.mxu0 0.0
  %176 = vmatpush1.msra.mxu0 %v57
  %177 = vmatprep.subr.mxu0 0.0
  %178 = vmatpush1.msra.mxu0 %v56
  %179 = vmatprep.subr.mxu0 0.0
  %180 = vmatpush1.msra.mxu0 %v55
  %181 = vmatprep.subr.mxu0 0.0
  %182 = vmatpush1.msra.mxu0 %v54
  %183 = vmatprep.subr.mxu0 0.0
  %184 = vmatpush1.msra.mxu0 %v53
  %185 = vmatprep.subr.mxu0 0.0
  %186 = vmatpush1.msra.mxu0 %v52
  %187 = vmatprep.subr.mxu0 0.0
  %188 = vmatpush1.msra.mxu0 %v51
  %189 = vmatprep.subr.mxu0 0.0
  %190 = vmatpush1.msra.mxu0 %v50
  %191 = vmatprep.subr.mxu0 0.0
  %192 = vmatpush2.msra.mxu0 %v81
  %193 = vmatprep.subr.mxu0 0.0
  %194 = vmatpush2.msra.mxu0 %v80
  %195 = vmatprep.subr.mxu0 0.0
  %196 = vmatpush2.msra.mxu0 %v79
  %197 = vmatprep.subr.mxu0 0.0
  %198 = vmatpush2.msra.mxu0 %v78
  %199 = vmatprep.subr.mxu0 0.0
  %200 = vmatpush2.msra.mxu0 %v77
  %201 = vmatprep.subr.mxu0 0.0
  %202 = vmatpush2.msra.mxu0 %v76
  %203 = vmatprep.subr.mxu0 0.0
  %204 = vmatpush2.msra.mxu0 %v75
  %205 = vmatprep.subr.mxu0 0.0
  %206 = vmatpush2.msra.mxu0 %v74
  %207 = vmatprep.subr.mxu0 0.0
  %208 = vmatpush2.msra.mxu0 %v73
  %209 = vmatprep.subr.mxu0 0.0
  %210 = vmatpush2.msra.mxu0 %v72
  %211 = vmatprep.subr.mxu0 0.0
  %212 = vmatpush2.msra.mxu0 %v71
  %213 = vmatprep.subr.mxu0 0.0
  %214 = vmatpush2.msra.mxu0 %v70
  %215 = vmatprep.subr.mxu0 0.0
  %216 = vmatpush2.msra.mxu0 %v69
  %217 = vmatprep.subr.mxu0 0.0
  %218 = vmatpush2.msra.mxu0 %v68
  %219 = vmatprep.subr.mxu0 0.0
  %220 = vmatpush2.msra.mxu0 %v67
  %221 = vmatprep.subr.mxu0 0.0
  %222 = vmatpush2.msra.mxu0 %v66
  %223 = vmatprep.mubr.f32.mxu0 %v17
  %224 = vmatmul.mubr.f32.gmra.mxu0 %v16
  %v225 = vpop.f32.mrf.mxu0
  %v226 = vadd.f32 %v156, %v225
  %v227 = vpop.f32.mrf.mxu0
  %228 = vdwg.mxu0
  %v229 = vmax.f32 %v226, 0.0
  %230 = vst [vmem:[%s3] sm:$0xff] %v229
  // Predicated region
  $region14: #{lenet5_forward.8} parent=0 // pred_check
    _
  $region15: #{lenet5_forward.8} parent=0 // pred_check_branch
    %232 = sbr.rel (0) target = $region17
  $region16: #{lenet5_forward.8} parent=0 // pred_region
    _
  $region17: #{lenet5_forward.8} parent=0 // pred_fallthru
    _
  // Predicated region
  $region18: #{lenet5_forward.8} parent=0 // pred_check
    _
  $region19: #{lenet5_forward.8} parent=0 // pred_check_branch
    %234 = sbr.rel (0) target = $region21
  $region20: #{lenet5_forward.8} parent=0 // pred_region
    _
  $region21: #{lenet5_forward.8} parent=0 // pred_fallthru
    _

// kernel: lenet5_forward.9
$region0: #{lenet5_forward.9}
  #allocation0 [shape = 'u32[]', space=smem, size = 0x4, offset = 0x4, fixed_abs, tag = 'smem constant byte address 0x4 - core index']
  #allocation1 [shape = 'u32[144,128]{1,0:T(1,128)}', space=vmem, size = 0x12000, scoped, tag = 'internal scratch']
  %s0 = inlined_call_operand.vmem [shape: f32[8,128], index: 0, kind: input, shape index: {}]
  %s1 = inlined_call_operand.vmem [shape: f32[128,128], index: 1, kind: input, shape index: {}]
  %s2 = inlined_call_operand.vmem [shape: f32[1,128], index: 2, kind: input, shape index: {}]
  %s3 = inlined_call_operand.vmem [shape: f32[128,128], index: 3, kind: input, shape index: {}]
  %s4 = inlined_call_operand.vmem [shape: f32[1,128], index: 4, kind: input, shape index: {}]
  %s5 = inlined_call_operand.vmem [shape: f32[8,128], index: 5, kind: output, shape index: {}]
  %s6 = sld [smem:[#allocation0]]
  $region30: #{lenet5_forward.9} parent=0
    _
  %s8 = ssub.s32 1, %s6
  %s9 = scalar_select 0, %s8, %s6
  // Predicated region
  $region2: #{lenet5_forward.9} parent=0 // pred_check
    _
  $region3: #{lenet5_forward.9} parent=0 // pred_check_branch
    %11 = sbr.rel (0) target = $region5
  $region4: #{lenet5_forward.9} parent=0 // pred_region
    _
  $region5: #{lenet5_forward.9} parent=0 // pred_fallthru
    _
  // Predicated region
  $region6: #{lenet5_forward.9} parent=0 // pred_check
    _
  $region7: #{lenet5_forward.9} parent=0 // pred_check_branch
    %13 = sbr.rel (0) target = $region9
  $region8: #{lenet5_forward.9} parent=0 // pred_region
    _
  $region9: #{lenet5_forward.9} parent=0 // pred_fallthru
    _
  // Predicated region
  $region10: #{lenet5_forward.9} parent=0 // pred_check
    _
  $region11: #{lenet5_forward.9} parent=0 // pred_check_branch
    %15 = sbr.rel (0) target = $region13
  $region12: #{lenet5_forward.9} parent=0 // pred_region
    _
  $region13: #{lenet5_forward.9} parent=0 // pred_fallthru
    _
  // Predicated region
  $region14: #{lenet5_forward.9} parent=0 // pred_check
    _
  $region15: #{lenet5_forward.9} parent=0 // pred_check_branch
    %17 = sbr.rel (0) target = $region17
  $region16: #{lenet5_forward.9} parent=0 // pred_region
    _
  $region17: #{lenet5_forward.9} parent=0 // pred_fallthru
    _
  // Predicated region
  $region18: #{lenet5_forward.9} parent=0 // pred_check
    _
  $region19: #{lenet5_forward.9} parent=0 // pred_check_branch
    %19 = sbr.rel (0) target = $region21
  $region20: #{lenet5_forward.9} parent=0 // pred_region
    _
  $region21: #{lenet5_forward.9} parent=0 // pred_fallthru
    _
  %v20 = vld [vmem:[%s0] sm:$0xff]
  %v21 = vld [vmem:[%s1] sm:$0xff]
  %v22 = vld [vmem:[%s1 + $0x8] sm:$0xff]
  %v23 = vld [vmem:[%s1 + $0x10] sm:$0xff]
  %v24 = vld [vmem:[%s1 + $0x18] sm:$0xff]
  %v25 = vld [vmem:[%s1 + $0x20] sm:$0xff]
  %v26 = vld [vmem:[%s1 + $0x28] sm:$0xff]
  %v27 = vld [vmem:[%s1 + $0x30] sm:$0xff]
  %v28 = vld [vmem:[%s1 + $0x38] sm:$0xff]
  %v29 = vld [vmem:[%s1 + $0x40] sm:$0xff]
  %v30 = vld [vmem:[%s1 + $0x48] sm:$0xff]
  %v31 = vld [vmem:[%s1 + $0x50] sm:$0xff]
  %v32 = vld [vmem:[%s1 + $0x58] sm:$0xff]
  %v33 = vld [vmem:[%s1 + $0x60] sm:$0xff]
  %v34 = vld [vmem:[%s1 + $0x68] sm:$0xff]
  %v35 = vld [vmem:[%s1 + $0x70] sm:$0xff]
  %v36 = vld [vmem:[%s1 + $0x78] sm:$0xff]
  %v37 = vld [vmem:[%s2] sm:$0x1]
  %v39 = vlaneseq
  %v40 = vshrl.u32 %v39, 7
  %v41 = vsub.s32 0, %v40
  %v42 = vrot.slane %v37, %v41
  %44 = vmatprep.subr.mxu0 0.0
  %45 = vmatpush1.msra.mxu0 %v36
  %46 = vmatprep.subr.mxu0 0.0
  %47 = vmatpush1.msra.mxu0 %v35
  %48 = vmatprep.subr.mxu0 0.0
  %49 = vmatpush1.msra.mxu0 %v34
  %50 = vmatprep.subr.mxu0 0.0
  %51 = vmatpush1.msra.mxu0 %v33
  %52 = vmatprep.subr.mxu0 0.0
  %53 = vmatpush1.msra.mxu0 %v32
  %54 = vmatprep.subr.mxu0 0.0
  %55 = vmatpush1.msra.mxu0 %v31
  %56 = vmatprep.subr.mxu0 0.0
  %57 = vmatpush1.msra.mxu0 %v30
  %58 = vmatprep.subr.mxu0 0.0
  %59 = vmatpush1.msra.mxu0 %v29
  %60 = vmatprep.subr.mxu0 0.0
  %61 = vmatpush1.msra.mxu0 %v28
  %62 = vmatprep.subr.mxu0 0.0
  %63 = vmatpush1.msra.mxu0 %v27
  %64 = vmatprep.subr.mxu0 0.0
  %65 = vmatpush1.msra.mxu0 %v26
  %66 = vmatprep.subr.mxu0 0.0
  %67 = vmatpush1.msra.mxu0 %v25
  %68 = vmatprep.subr.mxu0 0.0
  %69 = vmatpush1.msra.mxu0 %v24
  %70 = vmatprep.subr.mxu0 0.0
  %71 = vmatpush1.msra.mxu0 %v23
  %72 = vmatprep.subr.mxu0 0.0
  %73 = vmatpush1.msra.mxu0 %v22
  %74 = vmatprep.subr.mxu0 0.0
  %75 = vmatpush1.msra.mxu0 %v21
  %76 = vmatprep.subr.mxu0 0.0
  %77 = vmatpush2.msra.mxu0 0.0
  %78 = vmatprep.subr.mxu0 0.0
  %79 = vmatpush2.msra.mxu0 0.0
  %80 = vmatprep.subr.mxu0 0.0
  %81 = vmatpush2.msra.mxu0 0.0
  %82 = vmatprep.subr.mxu0 0.0
  %83 = vmatpush2.msra.mxu0 0.0
  %84 = vmatprep.subr.mxu0 0.0
  %85 = vmatpush2.msra.mxu0 0.0
  %86 = vmatprep.subr.mxu0 0.0
  %87 = vmatpush2.msra.mxu0 0.0
  %88 = vmatprep.subr.mxu0 0.0
  %89 = vmatpush2.msra.mxu0 0.0
  %90 = vmatprep.subr.mxu0 0.0
  %91 = vmatpush2.msra.mxu0 0.0
  %92 = vmatprep.subr.mxu0 0.0
  %93 = vmatpush2.msra.mxu0 0.0
  %94 = vmatprep.subr.mxu0 0.0
  %95 = vmatpush2.msra.mxu0 0.0
  %96 = vmatprep.subr.mxu0 0.0
  %97 = vmatpush2.msra.mxu0 0.0
  %98 = vmatprep.subr.mxu0 0.0
  %99 = vmatpush2.msra.mxu0 0.0
  %100 = vmatprep.subr.mxu0 0.0
  %101 = vmatpush2.msra.mxu0 0.0
  %102 = vmatprep.subr.mxu0 0.0
  %103 = vmatpush2.msra.mxu0 0.0
  %104 = vmatprep.subr.mxu0 0.0
  %105 = vmatpush2.msra.mxu0 0.0
  %106 = vmatprep.subr.mxu0 0.0
  %107 = vmatpush2.msra.mxu0 0.0
  %108 = vmatprep.mubr.f32.mxu0 0.0
  %109 = vmatmul.mubr.f32.gmra.mxu0 %v20
  %v110 = vpop.f32.mrf.mxu0
  %v111 = vadd.f32 %v42, %v110
  %v112 = vpop.f32.mrf.mxu0
  %113 = vdwg.mxu0
  %v114 = vmax.f32 %v111, 0.0
  %v115 = vld [vmem:[%s3] sm:$0xff]
  %v116 = vld [vmem:[%s3 + $0x8] sm:$0xff]
  %v117 = vld [vmem:[%s3 + $0x10] sm:$0xff]
  %v118 = vld [vmem:[%s3 + $0x18] sm:$0xff]
  %v119 = vld [vmem:[%s3 + $0x20] sm:$0xff]
  %v120 = vld [vmem:[%s3 + $0x28] sm:$0xff]
  %v121 = vld [vmem:[%s3 + $0x30] sm:$0xff]
  %v122 = vld [vmem:[%s3 + $0x38] sm:$0xff]
  %v123 = vld [vmem:[%s3 + $0x40] sm:$0xff]
  %v124 = vld [vmem:[%s3 + $0x48] sm:$0xff]
  %v125 = vld [vmem:[%s3 + $0x50] sm:$0xff]
  %v126 = vld [vmem:[%s3 + $0x58] sm:$0xff]
  %v127 = vld [vmem:[%s3 + $0x60] sm:$0xff]
  %v128 = vld [vmem:[%s3 + $0x68] sm:$0xff]
  %v129 = vld [vmem:[%s3 + $0x70] sm:$0xff]
  %v130 = vld [vmem:[%s3 + $0x78] sm:$0xff]
  %v131 = vld [vmem:[%s4] sm:$0x1]
  %v133 = vlaneseq
  %v134 = vshrl.u32 %v133, 7
  %v135 = vsub.s32 0, %v134
  %v136 = vrot.slane %v131, %v135
  %138 = vmatprep.subr.mxu0 0.0
  %139 = vmatpush1.msra.mxu0 %v130
  %140 = vmatprep.subr.mxu0 0.0
  %141 = vmatpush1.msra.mxu0 %v129
  %142 = vmatprep.subr.mxu0 0.0
  %143 = vmatpush1.msra.mxu0 %v128
  %144 = vmatprep.subr.mxu0 0.0
  %145 = vmatpush1.msra.mxu0 %v127
  %146 = vmatprep.subr.mxu0 0.0
  %147 = vmatpush1.msra.mxu0 %v126
  %148 = vmatprep.subr.mxu0 0.0
  %149 = vmatpush1.msra.mxu0 %v125
  %150 = vmatprep.subr.mxu0 0.0
  %151 = vmatpush1.msra.mxu0 %v124
  %152 = vmatprep.subr.mxu0 0.0
  %153 = vmatpush1.msra.mxu0 %v123
  %154 = vmatprep.subr.mxu0 0.0
  %155 = vmatpush1.msra.mxu0 %v122
  %156 = vmatprep.subr.mxu0 0.0
  %157 = vmatpush1.msra.mxu0 %v121
  %158 = vmatprep.subr.mxu0 0.0
  %159 = vmatpush1.msra.mxu0 %v120
  %160 = vmatprep.subr.mxu0 0.0
  %161 = vmatpush1.msra.mxu0 %v119
  %162 = vmatprep.subr.mxu0 0.0
  %163 = vmatpush1.msra.mxu0 %v118
  %164 = vmatprep.subr.mxu0 0.0
  %165 = vmatpush1.msra.mxu0 %v117
  %166 = vmatprep.subr.mxu0 0.0
  %167 = vmatpush1.msra.mxu0 %v116
  %168 = vmatprep.subr.mxu0 0.0
  %169 = vmatpush1.msra.mxu0 %v115
  %170 = vmatprep.subr.mxu0 0.0
  %171 = vmatpush2.msra.mxu0 0.0
  %172 = vmatprep.subr.mxu0 0.0
  %173 = vmatpush2.msra.mxu0 0.0
  %174 = vmatprep.subr.mxu0 0.0
  %175 = vmatpush2.msra.mxu0 0.0
  %176 = vmatprep.subr.mxu0 0.0
  %177 = vmatpush2.msra.mxu0 0.0
  %178 = vmatprep.subr.mxu0 0.0
  %179 = vmatpush2.msra.mxu0 0.0
  %180 = vmatprep.subr.mxu0 0.0
  %181 = vmatpush2.msra.mxu0 0.0
  %182 = vmatprep.subr.mxu0 0.0
  %183 = vmatpush2.msra.mxu0 0.0
  %184 = vmatprep.subr.mxu0 0.0
  %185 = vmatpush2.msra.mxu0 0.0
  %186 = vmatprep.subr.mxu0 0.0
  %187 = vmatpush2.msra.mxu0 0.0
  %188 = vmatprep.subr.mxu0 0.0
  %189 = vmatpush2.msra.mxu0 0.0
  %190 = vmatprep.subr.mxu0 0.0
  %191 = vmatpush2.msra.mxu0 0.0
  %192 = vmatprep.subr.mxu0 0.0
  %193 = vmatpush2.msra.mxu0 0.0
  %194 = vmatprep.subr.mxu0 0.0
  %195 = vmatpush2.msra.mxu0 0.0
  %196 = vmatprep.subr.mxu0 0.0
  %197 = vmatpush2.msra.mxu0 0.0
  %198 = vmatprep.subr.mxu0 0.0
  %199 = vmatpush2.msra.mxu0 0.0
  %200 = vmatprep.subr.mxu0 0.0
  %201 = vmatpush2.msra.mxu0 0.0
  %202 = vmatprep.mubr.f32.mxu0 0.0
  %203 = vmatmul.mubr.f32.gmra.mxu0 %v114
  %v204 = vpop.f32.mrf.mxu0
  %v205 = vadd.f32 %v136, %v204
  %v206 = vpop.f32.mrf.mxu0
  %207 = vdwg.mxu0
  %208 = vst [vmem:[%s5] sm:$0xff] %v205
  // Predicated region
  $region22: #{lenet5_forward.9} parent=0 // pred_check
    _
  $region23: #{lenet5_forward.9} parent=0 // pred_check_branch
    %210 = sbr.rel (0) target = $region25
  $region24: #{lenet5_forward.9} parent=0 // pred_region
    _
  $region25: #{lenet5_forward.9} parent=0 // pred_fallthru
    _
  // Predicated region
  $region26: #{lenet5_forward.9} parent=0 // pred_check
    _
  $region27: #{lenet5_forward.9} parent=0 // pred_check_branch
    %212 = sbr.rel (0) target = $region29
  $region28: #{lenet5_forward.9} parent=0 // pred_region
    _
  $region29: #{lenet5_forward.9} parent=0 // pred_fallthru
    _

</llo_original>
